<compile_context>
chip_gen: v7x
topology: tpu7x:2x2x1
jax: 0.10.0
libtpu: 0.0.40
codegen_flags: <defaults>
</compile_context>

<pallas_src>
import jax
import jax.numpy as jnp
from jax import lax
from jax.experimental import pallas as pl
from jax.experimental.pallas import tpu as pltpu

_LANE = 128
_SUBLANE = 8


def _round_up(x, m):
    return (x + m - 1) // m * m


def _compiler_params():
    # Tiny, fully VMEM-resident kernels (<1 MiB of buffers): a small explicit
    # scoped-VMEM limit keeps the compiler from reserving oversized buffers.
    # TODO(synk): for large batches on v7x, add a leading "parallel" batch
    # grid axis so work shards across both TensorCores.
    return pltpu.CompilerParams(
        dimension_semantics=("arbitrary",),
        vmem_limit_bytes=8 * 1024 * 1024,
    )


# ---------------------------------------------------------------------------
# Pallas kernel: fused GEMM + bias + ReLU (conv1 / conv2 im2col GEMMs)
# ---------------------------------------------------------------------------
def _gemm_bias_relu(x_bf16, w_bf16, b_f32):
    """relu(x @ w + b): bf16 MXU operands, f32 accumulate + f32 elementwise."""
    M, K = x_bf16.shape
    _, N = w_bf16.shape

    def kernel(x_ref, w_ref, b_ref, o_ref):
        acc = jnp.dot(x_ref[...], w_ref[...], preferred_element_type=jnp.float32)
        o_ref[...] = jnp.maximum(acc + b_ref[...], 0.0)

    cost = pl.CostEstimate(
        flops=2 * M * K * N,
        transcendentals=0,
        bytes_accessed=2 * (M * K + K * N) + 4 * (N + M * N),
    )
    return pl.pallas_call(
        kernel,
        out_shape=jax.ShapeDtypeStruct((M, N), jnp.float32),
        grid=(1,),
        in_specs=[
            pl.BlockSpec((M, K), lambda i: (0, 0)),
            pl.BlockSpec((K, N), lambda i: (0, 0)),
            pl.BlockSpec((1, N), lambda i: (0, 0)),
        ],
        out_specs=pl.BlockSpec((M, N), lambda i: (0, 0)),
        compiler_params=_compiler_params(),
        cost_estimate=cost,
    )(x_bf16, w_bf16, b_f32)


# ---------------------------------------------------------------------------
# Conv2d (valid, no dilation) = im2col (XLA data movement) + Pallas GEMM
# ---------------------------------------------------------------------------
# TODO(synk): im2col for conv1/conv2 is pure data movement left in XLA; an
# in-kernel strided-slice gather could remove two more launches.
def _im2col(x, kh, kw, stride):
    # x: (B, H, W, C) NHWC -> (B*OH*OW, kh*kw*C); feature order = (kh, kw, cin)
    B, H, W, C = x.shape
    OH = (H - kh) // stride + 1
    OW = (W - kw) // stride + 1
    cols = []
    for i in range(kh):
        for j in range(kw):
            patch = lax.slice(
                x,
                (0, i, j, 0),
                (B, i + stride * (OH - 1) + 1, j + stride * (OW - 1) + 1, C),
                (1, stride, stride, 1),
            )
            cols.append(patch)
    patches = jnp.concatenate(cols, axis=-1)            # (B, OH, OW, kh*kw*C)
    return patches.reshape(B * OH * OW, kh * kw * C), OH, OW


def conv2d_relu(x, w_oihw, b, stride):
    """Conv2d(valid) + ReLU: XLA im2col + one fused Pallas GEMM."""
    Cout, Cin, KH, KW = w_oihw.shape
    B = x.shape[0]
    patches, OH, OW = _im2col(x, KH, KW, stride)        # (M, K) f32
    M, K = patches.shape
    Mp = _round_up(M, _SUBLANE)                         # dense sublane tiles
    Np = _round_up(Cout, _LANE)                         # dense 128-lane stores
    patches = jnp.pad(patches, ((0, Mp - M), (0, 0))).astype(jnp.bfloat16)
    # im2col feature order (kh, kw, cin) -> weight matrix (KH*KW*Cin, Cout)
    w_mat = jnp.transpose(w_oihw, (2, 3, 1, 0)).reshape(K, Cout)
    w_mat = jnp.pad(w_mat, ((0, 0), (0, Np - Cout))).astype(jnp.bfloat16)
    b_row = jnp.pad(b, (0, Np - Cout)).reshape(1, Np).astype(jnp.float32)
    y = _gemm_bias_relu(patches, w_mat, b_row)          # (Mp, Np) f32
    return y[:M, :Cout].reshape(B, OH, OW, Cout)


# ---------------------------------------------------------------------------
# Fused Pallas kernel: conv3 (as dense) + all three heads (2 layers each)
# ---------------------------------------------------------------------------
def _fused_conv3_heads(x3, w3, b3, w1p, b1p, w2p, b2p, n_actions):
    """x3:(Mp,576) bf16, w3:(576,64), w1p:(64,384)=[pm1|pv1|v1],
    w2p:(384,128) block-diagonal [pm2;pv2;v2]. Output (Mp,128) f32 slab:
    lanes [0:na]=tanh(mean), [na:2na]=softplus(var), [2na]=value, rest pad."""
    Mp = x3.shape[0]
    na = n_actions

    def kernel(x_ref, w3_ref, b3_ref, w1_ref, b1_ref, w2_ref, b2_ref, o_ref):
        # conv3 == dense layer (3x3 kernel over the full 3x3 feature map)
        c = jnp.dot(x_ref[...], w3_ref[...], preferred_element_type=jnp.float32)
        c = jnp.maximum(c + b3_ref[...], 0.0)                       # (Mp, 64)
        # packed first head layer (pm1 | pv1 | v1)
        h = jnp.dot(c.astype(jnp.bfloat16), w1_ref[...],
                    preferred_element_type=jnp.float32)
        h = jnp.maximum(h + b1_ref[...], 0.0)                       # (Mp, 384)
        # packed block-diagonal second head layer -> one lane-dense slab
        o = jnp.dot(h.astype(jnp.bfloat16), w2_ref[...],
                    preferred_element_type=jnp.float32) + b2_ref[...]
        col = lax.broadcasted_iota(jnp.int32, o.shape, 1)
        tanh_o = jnp.tanh(o)
        # torch.nn.Softplus(beta=1, threshold=20)
        soft_o = jnp.where(o > 20.0, o, jnp.log1p(jnp.exp(jnp.minimum(o, 20.0))))
        o_ref[...] = jnp.where(col < na, tanh_o,
                               jnp.where(col < 2 * na, soft_o, o))

    K3, N3 = w3.shape
    K1, N1 = w1p.shape
    K2, N2 = w2p.shape
    cost = pl.CostEstimate(
        flops=2 * Mp * (K3 * N3 + K1 * N1 + K2 * N2),
        transcendentals=2 * Mp * N2,
        bytes_accessed=2 * (Mp * K3 + K3 * N3 + K1 * N1 + K2 * N2)
        + 4 * (N3 + N1 + N2 + Mp * N2),
    )
    return pl.pallas_call(
        kernel,
        out_shape=jax.ShapeDtypeStruct((Mp, N2), jnp.float32),
        grid=(1,),
        in_specs=[
            pl.BlockSpec((Mp, K3), lambda i: (0, 0)),
            pl.BlockSpec((K3, N3), lambda i: (0, 0)),
            pl.BlockSpec((1, N3), lambda i: (0, 0)),
            pl.BlockSpec((K1, N1), lambda i: (0, 0)),
            pl.BlockSpec((1, N1), lambda i: (0, 0)),
            pl.BlockSpec((K2, N2), lambda i: (0, 0)),
            pl.BlockSpec((1, N2), lambda i: (0, 0)),
        ],
        out_specs=pl.BlockSpec((Mp, N2), lambda i: (0, 0)),
        compiler_params=_compiler_params(),
        cost_estimate=cost,
    )(x3, w3, b3, w1p, b1p, w2p, b2p)


# ---------------------------------------------------------------------------
# ActorCritic forward
# ---------------------------------------------------------------------------
def actor_critic_forward(params, x_nchw):
    n_actions = params["pm2_b"].shape[0]
    assert 2 * n_actions + 1 <= _LANE

    x = x_nchw.astype(jnp.float32)               # fx = x.float()
    x = jnp.transpose(x, (0, 2, 3, 1))           # NCHW -> NHWC (channels on lanes)
    B = x.shape[0]

    x = conv2d_relu(x, params["conv1_w"], params["conv1_b"], 4)
    x = conv2d_relu(x, params["conv2_w"], params["conv2_b"], 2)

    # conv3's 3x3 kernel covers the entire remaining 3x3 map, so conv3 and all
    # six head matmuls collapse into chained GEMMs -> one fused Pallas kernel.
    Cout3, Cin3, KH3, KW3 = params["conv3_w"].shape
    assert x.shape[1] == KH3 and x.shape[2] == KW3, (
        "fused head kernel assumes conv3 output is 1x1 (e.g. 40x40 input)")

    Mp = _round_up(B, _SUBLANE)
    x3 = x.reshape(B, -1)                                   # NHWC == (kh,kw,cin)
    x3 = jnp.pad(x3, ((0, Mp - B), (0, 0))).astype(jnp.bfloat16)

    # conv3 weights as a GEMM matrix in the same (kh, kw, cin) order
    w3 = jnp.transpose(params["conv3_w"], (2, 3, 1, 0)).reshape(
        KH3 * KW3 * Cin3, Cout3)
    b3 = params["conv3_b"].reshape(1, Cout3).astype(jnp.float32)

    # pack the three first head layers side-by-side: (64, 384)
    w1p = jnp.concatenate([params["pm1_w"], params["pv1_w"], params["v1_w"]], axis=1)
    b1p = jnp.concatenate([params["pm1_b"], params["pv1_b"], params["v1_b"]]
                          ).reshape(1, -1).astype(jnp.float32)

    # pack the three second head layers block-diagonally into 128 dense lanes
    H = params["pm1_w"].shape[1]                             # 128
    na = n_actions
    w2p = jnp.zeros((3 * H, _LANE), jnp.float32)
    w2p = w2p.at[0 * H:1 * H, 0:na].set(params["pm2_w"])
    w2p = w2p.at[1 * H:2 * H, na:2 * na].set(params["pv2_w"])
    w2p = w2p.at[2 * H:3 * H, 2 * na:2 * na + 1].set(params["v2_w"])
    b2p = jnp.zeros((_LANE,), jnp.float32)
    b2p = b2p.at[0:na].set(params["pm2_b"])
    b2p = b2p.at[na:2 * na].set(params["pv2_b"])
    b2p = b2p.at[2 * na:2 * na + 1].set(params["v2_b"])
    b2p = b2p.reshape(1, _LANE)

    out = _fused_conv3_heads(
        x3, w3.astype(jnp.bfloat16), b3,
        w1p.astype(jnp.bfloat16), b1p,
        w2p.astype(jnp.bfloat16), b2p, n_actions)

    mean = out[:B, 0:na]
    var = out[:B, na:2 * na]
    value = out[:B, 2 * na:2 * na + 1]
    return mean, var, value


# ---------------------------------------------------------------------------
# Pure-JAX reference (numerical validation only)
# ---------------------------------------------------------------------------
def reference_forward(params, x_nchw):
    x = x_nchw.astype(jnp.float32)
    hp = lax.Precision.HIGHEST

    def conv(x, w, b, s):
        y = lax.conv_general_dilated(
            x, w, (s, s), "VALID",
            dimension_numbers=("NCHW", "OIHW", "NCHW"), precision=hp)
        return jax.nn.relu(y + b[None, :, None, None])

    x = conv(x, params["conv1_w"], params["conv1_b"], 4)
    x = conv(x, params["conv2_w"], params["conv2_b"], 2)
    x = conv(x, params["conv3_w"], params["conv3_b"], 1)
    f = x.reshape(x.shape[0], -1)

    def lin(h, w, b):
        return jnp.dot(h, w, precision=hp) + b

    mean = jnp.tanh(lin(jax.nn.relu(lin(f, params["pm1_w"], params["pm1_b"])),
                        params["pm2_w"], params["pm2_b"]))
    var = jax.nn.softplus(lin(jax.nn.relu(lin(f, params["pv1_w"], params["pv1_b"])),
                              params["pv2_w"], params["pv2_b"]))
    value = lin(jax.nn.relu(lin(f, params["v1_w"], params["v1_b"])),
                params["v2_w"], params["v2_b"])
    return mean, var, value


# ---------------------------------------------------------------------------
# Deterministic parameter init (synthetic weights, shapes from the nn.Module)
# ---------------------------------------------------------------------------
def init_params(key, in_ch, n_actions, conv_out_size):
    ks = jax.random.split(key, 18)
    s = 0.05

    def rn(k, shape):
        return s * jax.random.normal(k, shape, jnp.float32)

    return {
        "conv1_w": rn(ks[0], (32, in_ch, 8, 8)), "conv1_b": rn(ks[1], (32,)),
        "conv2_w": rn(ks[2], (64, 32, 4, 4)),    "conv2_b": rn(ks[3], (64,)),
        "conv3_w": rn(ks[4], (64, 64, 3, 3)),    "conv3_b": rn(ks[5], (64,)),
        # Linear weights stored as (in, out) == torch W.T
        "pm1_w": rn(ks[6], (conv_out_size, 128)),  "pm1_b": rn(ks[7], (128,)),
        "pm2_w": rn(ks[8], (128, n_actions)),      "pm2_b": rn(ks[9], (n_actions,)),
        "pv1_w": rn(ks[10], (conv_out_size, 128)), "pv1_b": rn(ks[11], (128,)),
        "pv2_w": rn(ks[12], (128, n_actions)),     "pv2_b": rn(ks[13], (n_actions,)),
        "v1_w":  rn(ks[14], (conv_out_size, 128)), "v1_b":  rn(ks[15], (128,)),
        "v2_w":  rn(ks[16], (128, 1)),             "v2_b":  rn(ks[17], (1,)),
    }


if __name__ == "__main__":
    # Shapes consistent with the conv stack: 40x40 input ->
    # conv1(k8,s4): 9x9 -> conv2(k4,s2): 3x3 -> conv3(k3,s1): 1x1 -> 64 features
    B, C, H, W = 2, 4, 40, 40
    n_actions = 3
    conv_out_size = 64 * 1 * 1

    key = jax.random.PRNGKey(0)
    k_params, k_x = jax.random.split(key)
    params = init_params(k_params, C, n_actions, conv_out_size)
    x = jax.random.normal(k_x, (B, C, H, W), jnp.float32)

    fwd = jax.jit(actor_critic_forward)
    mean, var, value = jax.block_until_ready(fwd(params, x))

    assert mean.shape == (B, n_actions)
    assert var.shape == (B, n_actions)
    assert value.shape == (B, 1)

    # validate against a pure-JAX f32 reference (bf16 MXU path -> loose tol)
    r_mean, r_var, r_value = jax.block_until_ready(jax.jit(reference_forward)(params, x))
    assert jnp.allclose(mean, r_mean, atol=2e-2, rtol=2e-2)
    assert jnp.allclose(var, r_var, atol=2e-2, rtol=2e-2)
    assert jnp.allclose(value, r_value, atol=2e-2, rtol=2e-2)

    print("KERNEL_OK")
</pallas_src>

<mosaic_0001>
module attributes {stable_mosaic.version = 11 : i64} {
  func.func @kernel(%arg0: i32, %arg1: memref<168x256xbf16, #tpu.memory_space<vmem>>, %arg2: memref<256x128xbf16, #tpu.memory_space<vmem>>, %arg3: memref<1x128xf32, #tpu.memory_space<vmem>>, %arg4: memref<168x128xf32, #tpu.memory_space<vmem>>) attributes {dimension_semantics = [#tpu.dimension_semantics<arbitrary>], iteration_bounds = array<i64: 1>, scalar_prefetch = 0 : i64, scratch_operands = 0 : i64, tpu.core_type = #tpu.core_type<tc>, window_params = [{pipeline_mode = #tpu.pipeline_mode<synchronous>, transform_indices = @transform_0, window_bounds = array<i64: 168, 256>}, {pipeline_mode = #tpu.pipeline_mode<synchronous>, transform_indices = @transform_1, window_bounds = array<i64: 256, 128>}, {pipeline_mode = #tpu.pipeline_mode<synchronous>, transform_indices = @transform_2, window_bounds = array<i64: 1, 128>}, {pipeline_mode = #tpu.pipeline_mode<synchronous>, transform_indices = @transform_3, window_bounds = array<i64: 168, 128>}]} {
    %c0 = arith.constant 0 : index
    %c0_0 = arith.constant 0 : index
    %0 = vector.load %arg1[%c0, %c0_0] : memref<168x256xbf16, #tpu.memory_space<vmem>>, vector<168x256xbf16>
    %c0_1 = arith.constant 0 : index
    %c0_2 = arith.constant 0 : index
    %1 = vector.load %arg2[%c0_1, %c0_2] : memref<256x128xbf16, #tpu.memory_space<vmem>>, vector<256x128xbf16>
    %cst = arith.constant dense<0.000000e+00> : vector<168x128xf32>
    %2 = tpu.matmul %0, %1, %cst {dimension_numbers = #tpu.dot_dimension_numbers<[1], [0], [0], [1], [0, 0, 1, 1], [], []>} : vector<168x256xbf16>, vector<256x128xbf16>, vector<168x128xf32> -> vector<168x128xf32>
    %c0_3 = arith.constant 0 : index
    %c0_4 = arith.constant 0 : index
    %3 = vector.load %arg3[%c0_3, %c0_4] : memref<1x128xf32, #tpu.memory_space<vmem>>, vector<1x128xf32>
    %4 = vector.broadcast %3 : vector<1x128xf32> to vector<168x128xf32>
    %5 = arith.addf %2, %4 : vector<168x128xf32>
    %cst_5 = arith.constant 0.000000e+00 : f32
    %6 = vector.broadcast %cst_5 : f32 to vector<168x128xf32>
    %7 = arith.maximumf %5, %6 : vector<168x128xf32>
    %c0_6 = arith.constant 0 : index
    %c0_7 = arith.constant 0 : index
    %8 = vector.load %arg4[%c0_6, %c0_7] : memref<168x128xf32, #tpu.memory_space<vmem>>, vector<168x128xf32>
    tpu.vector_store %arg4[%c0_6, %c0_7], %7 {strides = array<i32>} : memref<168x128xf32, #tpu.memory_space<vmem>>, vector<168x128xf32>,
    return
  }
  func.func @transform_0(%arg0: i32) -> (i32, i32) {
    %c0_i32 = arith.constant 0 : i32
    %c0_i32_0 = arith.constant 0 : i32
    %c0_i32_1 = arith.constant 0 : i32
    return %c0_i32, %c0_i32_0 : i32, i32
  }
  func.func @transform_1(%arg0: i32) -> (i32, i32) {
    %c0_i32 = arith.constant 0 : i32
    %c0_i32_0 = arith.constant 0 : i32
    %c0_i32_1 = arith.constant 0 : i32
    return %c0_i32, %c0_i32_0 : i32, i32
  }
  func.func @transform_2(%arg0: i32) -> (i32, i32) {
    %c0_i32 = arith.constant 0 : i32
    %c0_i32_0 = arith.constant 0 : i32
    %c0_i32_1 = arith.constant 0 : i32
    return %c0_i32, %c0_i32_0 : i32, i32
  }
  func.func @transform_3(%arg0: i32) -> (i32, i32) {
    %c0_i32 = arith.constant 0 : i32
    %c0_i32_0 = arith.constant 0 : i32
    %c0_i32_1 = arith.constant 0 : i32
    return %c0_i32, %c0_i32_0 : i32, i32
  }
}

module attributes {stable_mosaic.version = 11 : i64} {
  func.func @kernel(%arg0: i32, %arg1: memref<24x512xbf16, #tpu.memory_space<vmem>>, %arg2: memref<512x128xbf16, #tpu.memory_space<vmem>>, %arg3: memref<1x128xf32, #tpu.memory_space<vmem>>, %arg4: memref<24x128xf32, #tpu.memory_space<vmem>>) attributes {dimension_semantics = [#tpu.dimension_semantics<arbitrary>], iteration_bounds = array<i64: 1>, scalar_prefetch = 0 : i64, scratch_operands = 0 : i64, tpu.core_type = #tpu.core_type<tc>, window_params = [{pipeline_mode = #tpu.pipeline_mode<synchronous>, transform_indices = @transform_0, window_bounds = array<i64: 24, 512>}, {pipeline_mode = #tpu.pipeline_mode<synchronous>, transform_indices = @transform_1, window_bounds = array<i64: 512, 128>}, {pipeline_mode = #tpu.pipeline_mode<synchronous>, transform_indices = @transform_2, window_bounds = array<i64: 1, 128>}, {pipeline_mode = #tpu.pipeline_mode<synchronous>, transform_indices = @transform_3, window_bounds = array<i64: 24, 128>}]} {
    %c0 = arith.constant 0 : index
    %c0_0 = arith.constant 0 : index
    %0 = vector.load %arg1[%c0, %c0_0] : memref<24x512xbf16, #tpu.memory_space<vmem>>, vector<24x512xbf16>
    %c0_1 = arith.constant 0 : index
    %c0_2 = arith.constant 0 : index
    %1 = vector.load %arg2[%c0_1, %c0_2] : memref<512x128xbf16, #tpu.memory_space<vmem>>, vector<512x128xbf16>
    %cst = arith.constant dense<0.000000e+00> : vector<24x128xf32>
    %2 = tpu.matmul %0, %1, %cst {dimension_numbers = #tpu.dot_dimension_numbers<[1], [0], [0], [1], [0, 0, 1, 1], [], []>} : vector<24x512xbf16>, vector<512x128xbf16>, vector<24x128xf32> -> vector<24x128xf32>
    %c0_3 = arith.constant 0 : index
    %c0_4 = arith.constant 0 : index
    %3 = vector.load %arg3[%c0_3, %c0_4] : memref<1x128xf32, #tpu.memory_space<vmem>>, vector<1x128xf32>
    %4 = vector.broadcast %3 : vector<1x128xf32> to vector<24x128xf32>
    %5 = arith.addf %2, %4 : vector<24x128xf32>
    %cst_5 = arith.constant 0.000000e+00 : f32
    %6 = vector.broadcast %cst_5 : f32 to vector<24x128xf32>
    %7 = arith.maximumf %5, %6 : vector<24x128xf32>
    %c0_6 = arith.constant 0 : index
    %c0_7 = arith.constant 0 : index
    %8 = vector.load %arg4[%c0_6, %c0_7] : memref<24x128xf32, #tpu.memory_space<vmem>>, vector<24x128xf32>
    tpu.vector_store %arg4[%c0_6, %c0_7], %7 {strides = array<i32>} : memref<24x128xf32, #tpu.memory_space<vmem>>, vector<24x128xf32>,
    return
  }
  func.func @transform_0(%arg0: i32) -> (i32, i32) {
    %c0_i32 = arith.constant 0 : i32
    %c0_i32_0 = arith.constant 0 : i32
    %c0_i32_1 = arith.constant 0 : i32
    return %c0_i32, %c0_i32_0 : i32, i32
  }
  func.func @transform_1(%arg0: i32) -> (i32, i32) {
    %c0_i32 = arith.constant 0 : i32
    %c0_i32_0 = arith.constant 0 : i32
    %c0_i32_1 = arith.constant 0 : i32
    return %c0_i32, %c0_i32_0 : i32, i32
  }
  func.func @transform_2(%arg0: i32) -> (i32, i32) {
    %c0_i32 = arith.constant 0 : i32
    %c0_i32_0 = arith.constant 0 : i32
    %c0_i32_1 = arith.constant 0 : i32
    return %c0_i32, %c0_i32_0 : i32, i32
  }
  func.func @transform_3(%arg0: i32) -> (i32, i32) {
    %c0_i32 = arith.constant 0 : i32
    %c0_i32_0 = arith.constant 0 : i32
    %c0_i32_1 = arith.constant 0 : i32
    return %c0_i32, %c0_i32_0 : i32, i32
  }
}

module attributes {stable_mosaic.version = 11 : i64} {
  func.func @kernel(%arg0: i32, %arg1: memref<8x576xbf16, #tpu.memory_space<vmem>>, %arg2: memref<576x64xbf16, #tpu.memory_space<vmem>>, %arg3: memref<1x64xf32, #tpu.memory_space<vmem>>, %arg4: memref<64x384xbf16, #tpu.memory_space<vmem>>, %arg5: memref<1x384xf32, #tpu.memory_space<vmem>>, %arg6: memref<384x128xbf16, #tpu.memory_space<vmem>>, %arg7: memref<1x128xf32, #tpu.memory_space<vmem>>, %arg8: memref<8x128xf32, #tpu.memory_space<vmem>>) attributes {dimension_semantics = [#tpu.dimension_semantics<arbitrary>], iteration_bounds = array<i64: 1>, scalar_prefetch = 0 : i64, scratch_operands = 0 : i64, tpu.core_type = #tpu.core_type<tc>, window_params = [{pipeline_mode = #tpu.pipeline_mode<synchronous>, transform_indices = @transform_0, window_bounds = array<i64: 8, 576>}, {pipeline_mode = #tpu.pipeline_mode<synchronous>, transform_indices = @transform_1, window_bounds = array<i64: 576, 64>}, {pipeline_mode = #tpu.pipeline_mode<synchronous>, transform_indices = @transform_2, window_bounds = array<i64: 1, 64>}, {pipeline_mode = #tpu.pipeline_mode<synchronous>, transform_indices = @transform_3, window_bounds = array<i64: 64, 384>}, {pipeline_mode = #tpu.pipeline_mode<synchronous>, transform_indices = @transform_4, window_bounds = array<i64: 1, 384>}, {pipeline_mode = #tpu.pipeline_mode<synchronous>, transform_indices = @transform_5, window_bounds = array<i64: 384, 128>}, {pipeline_mode = #tpu.pipeline_mode<synchronous>, transform_indices = @transform_6, window_bounds = array<i64: 1, 128>}, {pipeline_mode = #tpu.pipeline_mode<synchronous>, transform_indices = @transform_7, window_bounds = array<i64: 8, 128>}]} {
    %c0 = arith.constant 0 : index
    %c0_0 = arith.constant 0 : index
    %0 = vector.load %arg1[%c0, %c0_0] : memref<8x576xbf16, #tpu.memory_space<vmem>>, vector<8x576xbf16>
    %c0_1 = arith.constant 0 : index
    %c0_2 = arith.constant 0 : index
    %1 = vector.load %arg2[%c0_1, %c0_2] : memref<576x64xbf16, #tpu.memory_space<vmem>>, vector<576x64xbf16>
    %cst = arith.constant dense<0.000000e+00> : vector<8x64xf32>
    %2 = tpu.matmul %0, %1, %cst {dimension_numbers = #tpu.dot_dimension_numbers<[1], [0], [0], [1], [0, 0, 1, 1], [], []>} : vector<8x576xbf16>, vector<576x64xbf16>, vector<8x64xf32> -> vector<8x64xf32>
    %c0_3 = arith.constant 0 : index
    %c0_4 = arith.constant 0 : index
    %3 = vector.load %arg3[%c0_3, %c0_4] : memref<1x64xf32, #tpu.memory_space<vmem>>, vector<1x64xf32>
    %4 = vector.broadcast %3 : vector<1x64xf32> to vector<8x64xf32>
    %5 = arith.addf %2, %4 : vector<8x64xf32>
    %cst_5 = arith.constant 0.000000e+00 : f32
    %6 = vector.broadcast %cst_5 : f32 to vector<8x64xf32>
    %7 = arith.maximumf %5, %6 : vector<8x64xf32>
    %8 = arith.truncf %7 : vector<8x64xf32> to vector<8x64xbf16>
    %c0_6 = arith.constant 0 : index
    %c0_7 = arith.constant 0 : index
    %9 = vector.load %arg4[%c0_6, %c0_7] : memref<64x384xbf16, #tpu.memory_space<vmem>>, vector<64x384xbf16>
    %cst_8 = arith.constant dense<0.000000e+00> : vector<8x384xf32>
    %10 = tpu.matmul %8, %9, %cst_8 {dimension_numbers = #tpu.dot_dimension_numbers<[1], [0], [0], [1], [0, 0, 1, 1], [], []>} : vector<8x64xbf16>, vector<64x384xbf16>, vector<8x384xf32> -> vector<8x384xf32>
    %c0_9 = arith.constant 0 : index
    %c0_10 = arith.constant 0 : index
    %11 = vector.load %arg5[%c0_9, %c0_10] : memref<1x384xf32, #tpu.memory_space<vmem>>, vector<1x384xf32>
    %12 = vector.broadcast %11 : vector<1x384xf32> to vector<8x384xf32>
    %13 = arith.addf %10, %12 : vector<8x384xf32>
    %cst_11 = arith.constant 0.000000e+00 : f32
    %14 = vector.broadcast %cst_11 : f32 to vector<8x384xf32>
    %15 = arith.maximumf %13, %14 : vector<8x384xf32>
    %16 = arith.truncf %15 : vector<8x384xf32> to vector<8x384xbf16>
    %c0_12 = arith.constant 0 : index
    %c0_13 = arith.constant 0 : index
    %17 = vector.load %arg6[%c0_12, %c0_13] : memref<384x128xbf16, #tpu.memory_space<vmem>>, vector<384x128xbf16>
    %cst_14 = arith.constant dense<0.000000e+00> : vector<8x128xf32>
    %18 = tpu.matmul %16, %17, %cst_14 {dimension_numbers = #tpu.dot_dimension_numbers<[1], [0], [0], [1], [0, 0, 1, 1], [], []>} : vector<8x384xbf16>, vector<384x128xbf16>, vector<8x128xf32> -> vector<8x128xf32>
    %c0_15 = arith.constant 0 : index
    %c0_16 = arith.constant 0 : index
    %19 = vector.load %arg7[%c0_15, %c0_16] : memref<1x128xf32, #tpu.memory_space<vmem>>, vector<1x128xf32>
    %20 = vector.broadcast %19 : vector<1x128xf32> to vector<8x128xf32>
    %21 = arith.addf %18, %20 : vector<8x128xf32>
    %22 = tpu.iota {dimensions = array<i32: 1>} : vector<8x128xi32>
    %23 = math.tanh %21 : vector<8x128xf32>
    %cst_17 = arith.constant 2.000000e+01 : f32
    %24 = vector.broadcast %cst_17 : f32 to vector<8x128xf32>
    %25 = arith.cmpf ogt, %21, %24 : vector<8x128xf32>
    %cst_18 = arith.constant 2.000000e+01 : f32
    %26 = vector.broadcast %cst_18 : f32 to vector<8x128xf32>
    %27 = arith.minimumf %21, %26 : vector<8x128xf32>
    %28 = math.exp %27 : vector<8x128xf32>
    %29 = math.log1p %28 : vector<8x128xf32>
    %30 = arith.select %25, %21, %29 : vector<8x128xi1>, vector<8x128xf32>
    %c3_i32 = arith.constant 3 : i32
    %31 = vector.broadcast %c3_i32 : i32 to vector<8x128xi32>
    %32 = arith.cmpi slt, %22, %31 : vector<8x128xi32>
    %c6_i32 = arith.constant 6 : i32
    %33 = vector.broadcast %c6_i32 : i32 to vector<8x128xi32>
    %34 = arith.cmpi slt, %22, %33 : vector<8x128xi32>
    %35 = arith.select %34, %30, %21 : vector<8x128xi1>, vector<8x128xf32>
    %36 = arith.select %32, %23, %35 : vector<8x128xi1>, vector<8x128xf32>
    %c0_19 = arith.constant 0 : index
    %c0_20 = arith.constant 0 : index
    %37 = vector.load %arg8[%c0_19, %c0_20] : memref<8x128xf32, #tpu.memory_space<vmem>>, vector<8x128xf32>
    tpu.vector_store %arg8[%c0_19, %c0_20], %36 {strides = array<i32>} : memref<8x128xf32, #tpu.memory_space<vmem>>, vector<8x128xf32>,
    return
  }
  func.func @transform_0(%arg0: i32) -> (i32, i32) {
    %c0_i32 = arith.constant 0 : i32
    %c0_i32_0 = arith.constant 0 : i32
    %c0_i32_1 = arith.constant 0 : i32
    return %c0_i32, %c0_i32_0 : i32, i32
  }
  func.func @transform_1(%arg0: i32) -> (i32, i32) {
    %c0_i32 = arith.constant 0 : i32
    %c0_i32_0 = arith.constant 0 : i32
    %c0_i32_1 = arith.constant 0 : i32
    return %c0_i32, %c0_i32_0 : i32, i32
  }
  func.func @transform_2(%arg0: i32) -> (i32, i32) {
    %c0_i32 = arith.constant 0 : i32
    %c0_i32_0 = arith.constant 0 : i32
    %c0_i32_1 = arith.constant 0 : i32
    return %c0_i32, %c0_i32_0 : i32, i32
  }
  func.func @transform_3(%arg0: i32) -> (i32, i32) {
    %c0_i32 = arith.constant 0 : i32
    %c0_i32_0 = arith.constant 0 : i32
    %c0_i32_1 = arith.constant 0 : i32
    return %c0_i32, %c0_i32_0 : i32, i32
  }
  func.func @transform_4(%arg0: i32) -> (i32, i32) {
    %c0_i32 = arith.constant 0 : i32
    %c0_i32_0 = arith.constant 0 : i32
    %c0_i32_1 = arith.constant 0 : i32
    return %c0_i32, %c0_i32_0 : i32, i32
  }
  func.func @transform_5(%arg0: i32) -> (i32, i32) {
    %c0_i32 = arith.constant 0 : i32
    %c0_i32_0 = arith.constant 0 : i32
    %c0_i32_1 = arith.constant 0 : i32
    return %c0_i32, %c0_i32_0 : i32, i32
  }
  func.func @transform_6(%arg0: i32) -> (i32, i32) {
    %c0_i32 = arith.constant 0 : i32
    %c0_i32_0 = arith.constant 0 : i32
    %c0_i32_1 = arith.constant 0 : i32
    return %c0_i32, %c0_i32_0 : i32, i32
  }
  func.func @transform_7(%arg0: i32) -> (i32, i32) {
    %c0_i32 = arith.constant 0 : i32
    %c0_i32_0 = arith.constant 0 : i32
    %c0_i32_1 = arith.constant 0 : i32
    return %c0_i32, %c0_i32_0 : i32, i32
  }
}

</mosaic_0001>

<llo_original>
// kernel: actor_critic_forward.4
$region0: #{actor_critic_forward.4}
  #allocation0 [shape = 'u32[]', space=smem, size = 0x4, offset = 0x4, fixed_abs, tag = 'smem constant byte address 0x4 - core index']
  #allocation1 [shape = 'u32[144,128]{1,0:T(1,128)}', space=vmem, size = 0x12000, scoped, tag = 'internal scratch']
  %s0 = inlined_call_operand.vmem [shape: bf16[24,512], index: 0, kind: input, shape index: {}]
  %s1 = inlined_call_operand.vmem [shape: bf16[512,128], index: 1, kind: input, shape index: {}]
  %s2 = inlined_call_operand.vmem [shape: f32[1,128], index: 2, kind: input, shape index: {}]
  %s3 = inlined_call_operand.vmem [shape: f32[24,128], index: 3, kind: output, shape index: {}]
  %s4 = sld [smem:[#allocation0]]
  $region22: #{actor_critic_forward.4} parent=0
    _
  %s6 = ssub.s32 1, %s4
  %s7 = scalar_select 0, %s6, %s4
  // Predicated region
  $region2: #{actor_critic_forward.4} parent=0 // pred_check
    _
  $region3: #{actor_critic_forward.4} parent=0 // pred_check_branch
    %9 = sbr.rel (0) target = $region5
  $region4: #{actor_critic_forward.4} parent=0 // pred_region
    _
  $region5: #{actor_critic_forward.4} parent=0 // pred_fallthru
    _
  // Predicated region
  $region6: #{actor_critic_forward.4} parent=0 // pred_check
    _
  $region7: #{actor_critic_forward.4} parent=0 // pred_check_branch
    %11 = sbr.rel (0) target = $region9
  $region8: #{actor_critic_forward.4} parent=0 // pred_region
    _
  $region9: #{actor_critic_forward.4} parent=0 // pred_fallthru
    _
  // Predicated region
  $region10: #{actor_critic_forward.4} parent=0 // pred_check
    _
  $region11: #{actor_critic_forward.4} parent=0 // pred_check_branch
    %13 = sbr.rel (0) target = $region13
  $region12: #{actor_critic_forward.4} parent=0 // pred_region
    _
  $region13: #{actor_critic_forward.4} parent=0 // pred_fallthru
    _
  %v15 = vld [vmem:[%s0] sm:$0xff]
  %v16 = vld [vmem:[%s0 + $0x8] sm:$0xff]
  %v17 = vld [vmem:[%s0 + $0x10] sm:$0xff]
  %v18 = vld [vmem:[%s0 + $0x18] sm:$0xff]
  %v19 = vld [vmem:[%s0 + $0x20] sm:$0xff]
  %v20 = vld [vmem:[%s0 + $0x28] sm:$0xff]
  %v21 = vld [vmem:[%s1] sm:$0xf]
  %v22 = vld [vmem:[%s1 + $0x4] sm:$0xf]
  %v23 = vld [vmem:[%s1 + $0x8] sm:$0xf]
  %v24 = vld [vmem:[%s1 + $0xc] sm:$0xf]
  %v25 = vld [vmem:[%s1 + $0x10] sm:$0xf]
  %v26 = vld [vmem:[%s1 + $0x14] sm:$0xf]
  %v27 = vld [vmem:[%s1 + $0x18] sm:$0xf]
  %v28 = vld [vmem:[%s1 + $0x1c] sm:$0xf]
  %v29 = vld [vmem:[%s1 + $0x20] sm:$0xf]
  %v30 = vld [vmem:[%s1 + $0x24] sm:$0xf]
  %v31 = vld [vmem:[%s1 + $0x28] sm:$0xf]
  %v32 = vld [vmem:[%s1 + $0x2c] sm:$0xf]
  %v33 = vld [vmem:[%s1 + $0x30] sm:$0xf]
  %v34 = vld [vmem:[%s1 + $0x34] sm:$0xf]
  %v35 = vld [vmem:[%s1 + $0x38] sm:$0xf]
  %v36 = vld [vmem:[%s1 + $0x3c] sm:$0xf]
  %v37 = vld [vmem:[%s1 + $0x40] sm:$0xf]
  %v38 = vld [vmem:[%s1 + $0x44] sm:$0xf]
  %v39 = vld [vmem:[%s1 + $0x48] sm:$0xf]
  %v40 = vld [vmem:[%s1 + $0x4c] sm:$0xf]
  %v41 = vld [vmem:[%s1 + $0x50] sm:$0xf]
  %v42 = vld [vmem:[%s1 + $0x54] sm:$0xf]
  %v43 = vld [vmem:[%s1 + $0x58] sm:$0xf]
  %v44 = vld [vmem:[%s1 + $0x5c] sm:$0xf]
  %v45 = vld [vmem:[%s1 + $0x60] sm:$0xf]
  %v46 = vld [vmem:[%s1 + $0x64] sm:$0xf]
  %v47 = vld [vmem:[%s1 + $0x68] sm:$0xf]
  %v48 = vld [vmem:[%s1 + $0x6c] sm:$0xf]
  %v49 = vld [vmem:[%s1 + $0x70] sm:$0xf]
  %v50 = vld [vmem:[%s1 + $0x74] sm:$0xf]
  %v51 = vld [vmem:[%s1 + $0x78] sm:$0xf]
  %v52 = vld [vmem:[%s1 + $0x7c] sm:$0xf]
  %v53 = vld [vmem:[%s1 + $0x80] sm:$0xf]
  %v54 = vld [vmem:[%s1 + $0x84] sm:$0xf]
  %v55 = vld [vmem:[%s1 + $0x88] sm:$0xf]
  %v56 = vld [vmem:[%s1 + $0x8c] sm:$0xf]
  %v57 = vld [vmem:[%s1 + $0x90] sm:$0xf]
  %v58 = vld [vmem:[%s1 + $0x94] sm:$0xf]
  %v59 = vld [vmem:[%s1 + $0x98] sm:$0xf]
  %v60 = vld [vmem:[%s1 + $0x9c] sm:$0xf]
  %v61 = vld [vmem:[%s1 + $0xa0] sm:$0xf]
  %v62 = vld [vmem:[%s1 + $0xa4] sm:$0xf]
  %v63 = vld [vmem:[%s1 + $0xa8] sm:$0xf]
  %v64 = vld [vmem:[%s1 + $0xac] sm:$0xf]
  %v65 = vld [vmem:[%s1 + $0xb0] sm:$0xf]
  %v66 = vld [vmem:[%s1 + $0xb4] sm:$0xf]
  %v67 = vld [vmem:[%s1 + $0xb8] sm:$0xf]
  %v68 = vld [vmem:[%s1 + $0xbc] sm:$0xf]
  %v69 = vld [vmem:[%s1 + $0xc0] sm:$0xf]
  %v70 = vld [vmem:[%s1 + $0xc4] sm:$0xf]
  %v71 = vld [vmem:[%s1 + $0xc8] sm:$0xf]
  %v72 = vld [vmem:[%s1 + $0xcc] sm:$0xf]
  %v73 = vld [vmem:[%s1 + $0xd0] sm:$0xf]
  %v74 = vld [vmem:[%s1 + $0xd4] sm:$0xf]
  %v75 = vld [vmem:[%s1 + $0xd8] sm:$0xf]
  %v76 = vld [vmem:[%s1 + $0xdc] sm:$0xf]
  %v77 = vld [vmem:[%s1 + $0xe0] sm:$0xf]
  %v78 = vld [vmem:[%s1 + $0xe4] sm:$0xf]
  %v79 = vld [vmem:[%s1 + $0xe8] sm:$0xf]
  %v80 = vld [vmem:[%s1 + $0xec] sm:$0xf]
  %v81 = vld [vmem:[%s1 + $0xf0] sm:$0xf]
  %v82 = vld [vmem:[%s1 + $0xf4] sm:$0xf]
  %v83 = vld [vmem:[%s1 + $0xf8] sm:$0xf]
  %v84 = vld [vmem:[%s1 + $0xfc] sm:$0xf]
  %v85 = vld [vmem:[%s2] sm:$0x1]
  %v87 = vlaneseq
  %v88 = vshrl.u32 %v87, 7
  %v89 = vsub.s32 0, %v88
  %v90 = vrot.slane %v85, %v89
  %v98 = vunpack.c.l.b16 %v15
  %v99 = vunpack.c.h.b16 %v15
  %v100 = vunpack.c.l.b16 %v16
  %v101 = vunpack.c.h.b16 %v16
  %v102 = vunpack.c.l.b16 %v17
  %v103 = vunpack.c.h.b16 %v17
  %v104 = vunpack.c.l.b16 %v18
  %v105 = vunpack.c.h.b16 %v18
  %v106 = vunpack.c.l.b16 %v19
  %v107 = vunpack.c.h.b16 %v19
  %v108 = vunpack.c.l.b16 %v20
  %v109 = vunpack.c.h.b16 %v20
  %v110 = vpack.c.b16 %v102, %v98
  %v111 = vpack.c.b16 %v103, %v99
  %v112 = vpack.c.b16 %v104, %v100
  %v113 = vpack.c.b16 %v105, %v101
  %v114 = vpack.c.b16 %v106, %v106
  %v115 = vpack.c.b16 %v107, %v107
  %v116 = vpack.c.b16 %v108, %v108
  %v117 = vpack.c.b16 %v109, %v109
  %v190 = vunpack.c.l.b16 %v21
  %v191 = vunpack.c.l.b16 %v22
  %v192 = vunpack.c.l.b16 %v23
  %v193 = vunpack.c.l.b16 %v24
  %v194 = vunpack.c.l.b16 %v25
  %v195 = vunpack.c.l.b16 %v26
  %v196 = vunpack.c.l.b16 %v27
  %v197 = vunpack.c.l.b16 %v28
  %v198 = vunpack.c.l.b16 %v29
  %v199 = vunpack.c.l.b16 %v30
  %v200 = vunpack.c.l.b16 %v31
  %v201 = vunpack.c.l.b16 %v32
  %v202 = vunpack.c.l.b16 %v33
  %v203 = vunpack.c.l.b16 %v34
  %v204 = vunpack.c.l.b16 %v35
  %v205 = vunpack.c.l.b16 %v36
  %v206 = vunpack.c.l.b16 %v37
  %v207 = vunpack.c.l.b16 %v38
  %v208 = vunpack.c.l.b16 %v39
  %v209 = vunpack.c.l.b16 %v40
  %v210 = vunpack.c.l.b16 %v41
  %v211 = vunpack.c.l.b16 %v42
  %v212 = vunpack.c.l.b16 %v43
  %v213 = vunpack.c.l.b16 %v44
  %v214 = vunpack.c.l.b16 %v45
  %v215 = vunpack.c.l.b16 %v46
  %v216 = vunpack.c.l.b16 %v47
  %v217 = vunpack.c.l.b16 %v48
  %v218 = vunpack.c.l.b16 %v49
  %v219 = vunpack.c.l.b16 %v50
  %v220 = vunpack.c.l.b16 %v51
  %v221 = vunpack.c.l.b16 %v52
  %v222 = vunpack.c.l.b16 %v53
  %v223 = vunpack.c.l.b16 %v54
  %v224 = vunpack.c.l.b16 %v55
  %v225 = vunpack.c.l.b16 %v56
  %v226 = vunpack.c.l.b16 %v57
  %v227 = vunpack.c.l.b16 %v58
  %v228 = vunpack.c.l.b16 %v59
  %v229 = vunpack.c.l.b16 %v60
  %v230 = vunpack.c.l.b16 %v61
  %v231 = vunpack.c.l.b16 %v62
  %v232 = vunpack.c.l.b16 %v63
  %v233 = vunpack.c.l.b16 %v64
  %v234 = vunpack.c.l.b16 %v65
  %v235 = vunpack.c.l.b16 %v66
  %v236 = vunpack.c.l.b16 %v67
  %v237 = vunpack.c.l.b16 %v68
  %v238 = vunpack.c.l.b16 %v69
  %v239 = vunpack.c.l.b16 %v70
  %v240 = vunpack.c.l.b16 %v71
  %v241 = vunpack.c.l.b16 %v72
  %v242 = vunpack.c.l.b16 %v73
  %v243 = vunpack.c.l.b16 %v74
  %v244 = vunpack.c.l.b16 %v75
  %v245 = vunpack.c.l.b16 %v76
  %v246 = vunpack.c.l.b16 %v77
  %v247 = vunpack.c.l.b16 %v78
  %v248 = vunpack.c.l.b16 %v79
  %v249 = vunpack.c.l.b16 %v80
  %v250 = vunpack.c.l.b16 %v81
  %v251 = vunpack.c.l.b16 %v82
  %v252 = vunpack.c.l.b16 %v83
  %v253 = vunpack.c.l.b16 %v84
  %v254 = vpack.c.b16 %v191, %v190
  %v255 = vpack.c.b16 %v193, %v192
  %v256 = vpack.c.b16 %v195, %v194
  %v257 = vpack.c.b16 %v197, %v196
  %v258 = vpack.c.b16 %v199, %v198
  %v259 = vpack.c.b16 %v201, %v200
  %v260 = vpack.c.b16 %v203, %v202
  %v261 = vpack.c.b16 %v205, %v204
  %v262 = vpack.c.b16 %v207, %v206
  %v263 = vpack.c.b16 %v209, %v208
  %v264 = vpack.c.b16 %v211, %v210
  %v265 = vpack.c.b16 %v213, %v212
  %v266 = vpack.c.b16 %v215, %v214
  %v267 = vpack.c.b16 %v217, %v216
  %v268 = vpack.c.b16 %v219, %v218
  %v269 = vpack.c.b16 %v221, %v220
  %v270 = vpack.c.b16 %v223, %v222
  %v271 = vpack.c.b16 %v225, %v224
  %v272 = vpack.c.b16 %v227, %v226
  %v273 = vpack.c.b16 %v229, %v228
  %v274 = vpack.c.b16 %v231, %v230
  %v275 = vpack.c.b16 %v233, %v232
  %v276 = vpack.c.b16 %v235, %v234
  %v277 = vpack.c.b16 %v237, %v236
  %v278 = vpack.c.b16 %v239, %v238
  %v279 = vpack.c.b16 %v241, %v240
  %v280 = vpack.c.b16 %v243, %v242
  %v281 = vpack.c.b16 %v245, %v244
  %v282 = vpack.c.b16 %v247, %v246
  %v283 = vpack.c.b16 %v249, %v248
  %v284 = vpack.c.b16 %v251, %v250
  %v285 = vpack.c.b16 %v253, %v252
  %318 = vmatprep.subr.bf16.mxu0 0
  %319 = vmatpush1.bf16.msra.mxu0 %v254
  %320 = vmatprep.subr.bf16.mxu0 0
  %321 = vmatpush1.bf16.msra.mxu0 %v255
  %322 = vmatprep.subr.bf16.mxu0 0
  %323 = vmatpush1.bf16.msra.mxu0 %v256
  %324 = vmatprep.subr.bf16.mxu0 0
  %325 = vmatpush1.bf16.msra.mxu0 %v257
  %326 = vmatprep.subr.bf16.mxu0 0
  %327 = vmatpush1.bf16.msra.mxu0 %v258
  %328 = vmatprep.subr.bf16.mxu0 0
  %329 = vmatpush1.bf16.msra.mxu0 %v259
  %330 = vmatprep.subr.bf16.mxu0 0
  %331 = vmatpush1.bf16.msra.mxu0 %v260
  %332 = vmatprep.subr.bf16.mxu0 0
  %333 = vmatpush1.bf16.msra.mxu0 %v261
  %334 = vmatprep.subr.bf16.mxu0 0
  %335 = vmatpush1.bf16.msra.mxu0 %v262
  %336 = vmatprep.subr.bf16.mxu0 0
  %337 = vmatpush1.bf16.msra.mxu0 %v263
  %338 = vmatprep.subr.bf16.mxu0 0
  %339 = vmatpush1.bf16.msra.mxu0 %v264
  %340 = vmatprep.subr.bf16.mxu0 0
  %341 = vmatpush1.bf16.msra.mxu0 %v265
  %342 = vmatprep.subr.bf16.mxu0 0
  %343 = vmatpush1.bf16.msra.mxu0 %v266
  %344 = vmatprep.subr.bf16.mxu0 0
  %345 = vmatpush1.bf16.msra.mxu0 %v267
  %346 = vmatprep.subr.bf16.mxu0 0
  %347 = vmatpush1.bf16.msra.mxu0 %v268
  %348 = vmatprep.subr.bf16.mxu0 0
  %349 = vmatpush1.bf16.msra.mxu0 %v269
  %350 = vmatprep.mubr.bf16.mxu0 %v111
  %351 = vmatmul.mubr.bf16.gmra.mrb[0].mxu0 %v110
  %v352 = vpop.f32.mrb[0].mxu0
  %v353 = vadd.f32 %v90, %v352
  %v354 = vpop.f32.mrb[0].mxu0
  %v355 = vpop.f32.mrb[0].mxu0
  %v356 = vadd.f32 %v90, %v355
  %v357 = vpop.f32.mrb[0].mxu0
  %358 = vmatprep.mubr.bf16.mxu0 %v115
  %359 = vmatmul.mubr.bf16.gmra.mrb[0].mxu0 %v114
  %v360 = vpop.f32.mrb[0].mxu0
  %v361 = vadd.f32 %v90, %v360
  %v362 = vpop.f32.mrb[0].mxu0
  %v363 = vpop.f32.mrb[0].mxu0
  %v364 = vpop.f32.mrb[0].mxu0
  %365 = vdwg.mxu0
  %366 = vmatprep.subr.bf16.mxu0 0
  %367 = vmatpush1.bf16.msra.mxu0 %v270
  %368 = vmatprep.subr.bf16.mxu0 0
  %369 = vmatpush1.bf16.msra.mxu0 %v271
  %370 = vmatprep.subr.bf16.mxu0 0
  %371 = vmatpush1.bf16.msra.mxu0 %v272
  %372 = vmatprep.subr.bf16.mxu0 0
  %373 = vmatpush1.bf16.msra.mxu0 %v273
  %374 = vmatprep.subr.bf16.mxu0 0
  %375 = vmatpush1.bf16.msra.mxu0 %v274
  %376 = vmatprep.subr.bf16.mxu0 0
  %377 = vmatpush1.bf16.msra.mxu0 %v275
  %378 = vmatprep.subr.bf16.mxu0 0
  %379 = vmatpush1.bf16.msra.mxu0 %v276
  %380 = vmatprep.subr.bf16.mxu0 0
  %381 = vmatpush1.bf16.msra.mxu0 %v277
  %382 = vmatprep.subr.bf16.mxu0 0
  %383 = vmatpush1.bf16.msra.mxu0 %v278
  %384 = vmatprep.subr.bf16.mxu0 0
  %385 = vmatpush1.bf16.msra.mxu0 %v279
  %386 = vmatprep.subr.bf16.mxu0 0
  %387 = vmatpush1.bf16.msra.mxu0 %v280
  %388 = vmatprep.subr.bf16.mxu0 0
  %389 = vmatpush1.bf16.msra.mxu0 %v281
  %390 = vmatprep.subr.bf16.mxu0 0
  %391 = vmatpush1.bf16.msra.mxu0 %v282
  %392 = vmatprep.subr.bf16.mxu0 0
  %393 = vmatpush1.bf16.msra.mxu0 %v283
  %394 = vmatprep.subr.bf16.mxu0 0
  %395 = vmatpush1.bf16.msra.mxu0 %v284
  %396 = vmatprep.subr.bf16.mxu0 0
  %397 = vmatpush1.bf16.msra.mxu0 %v285
  %398 = vmatprep.mubr.bf16.mxu0 %v113
  %399 = vmatmul.mubr.bf16.gmra.mrb[0].mxu0 %v112
  %v400 = vpop.f32.mrb[0].mxu0
  %v401 = vadd.f32 %v353, %v400
  %v402 = vpop.f32.mrb[0].mxu0
  %v403 = vpop.f32.mrb[0].mxu0
  %v404 = vadd.f32 %v356, %v403
  %v405 = vpop.f32.mrb[0].mxu0
  %406 = vmatprep.mubr.bf16.mxu0 %v117
  %407 = vmatmul.mubr.bf16.gmra.mrb[0].mxu0 %v116
  %v408 = vpop.f32.mrb[0].mxu0
  %v409 = vadd.f32 %v361, %v408
  %v410 = vpop.f32.mrb[0].mxu0
  %v411 = vpop.f32.mrb[0].mxu0
  %v412 = vpop.f32.mrb[0].mxu0
  %413 = vdwg.mxu0
  %v414 = vmax.f32 %v401, 0.0
  %v415 = vmax.f32 %v404, 0.0
  %v416 = vmax.f32 %v409, 0.0
  %417 = vst [vmem:[%s3] sm:$0xff] %v414
  %418 = vst [vmem:[%s3 + $0x8] sm:$0xff] %v415
  %419 = vst [vmem:[%s3 + $0x10] sm:$0xff] %v416
  // Predicated region
  $region14: #{actor_critic_forward.4} parent=0 // pred_check
    _
  $region15: #{actor_critic_forward.4} parent=0 // pred_check_branch
    %421 = sbr.rel (0) target = $region17
  $region16: #{actor_critic_forward.4} parent=0 // pred_region
    _
  $region17: #{actor_critic_forward.4} parent=0 // pred_fallthru
    _
  // Predicated region
  $region18: #{actor_critic_forward.4} parent=0 // pred_check
    _
  $region19: #{actor_critic_forward.4} parent=0 // pred_check_branch
    %423 = sbr.rel (0) target = $region21
  $region20: #{actor_critic_forward.4} parent=0 // pred_region
    _
  $region21: #{actor_critic_forward.4} parent=0 // pred_fallthru
    _

// kernel: actor_critic_forward.3
$region0: #{actor_critic_forward.3}
  #allocation0 [shape = 'u32[]', space=smem, size = 0x4, offset = 0x4, fixed_abs, tag = 'smem constant byte address 0x4 - core index']
  #allocation1 [shape = 'u32[144,128]{1,0:T(1,128)}', space=vmem, size = 0x12000, scoped, tag = 'internal scratch']
  %s0 = inlined_call_operand.vmem [shape: bf16[168,256], index: 0, kind: input, shape index: {}]
  %s1 = inlined_call_operand.vmem [shape: bf16[256,128], index: 1, kind: input, shape index: {}]
  %s2 = inlined_call_operand.vmem [shape: f32[1,128], index: 2, kind: input, shape index: {}]
  %s3 = inlined_call_operand.vmem [shape: f32[168,128], index: 3, kind: output, shape index: {}]
  %s4 = sld [smem:[#allocation0]]
  $region22: #{actor_critic_forward.3} parent=0
    _
  %s6 = ssub.s32 1, %s4
  %s7 = scalar_select 0, %s6, %s4
  // Predicated region
  $region2: #{actor_critic_forward.3} parent=0 // pred_check
    _
  $region3: #{actor_critic_forward.3} parent=0 // pred_check_branch
    %9 = sbr.rel (0) target = $region5
  $region4: #{actor_critic_forward.3} parent=0 // pred_region
    _
  $region5: #{actor_critic_forward.3} parent=0 // pred_fallthru
    _
  // Predicated region
  $region6: #{actor_critic_forward.3} parent=0 // pred_check
    _
  $region7: #{actor_critic_forward.3} parent=0 // pred_check_branch
    %11 = sbr.rel (0) target = $region9
  $region8: #{actor_critic_forward.3} parent=0 // pred_region
    _
  $region9: #{actor_critic_forward.3} parent=0 // pred_fallthru
    _
  // Predicated region
  $region10: #{actor_critic_forward.3} parent=0 // pred_check
    _
  $region11: #{actor_critic_forward.3} parent=0 // pred_check_branch
    %13 = sbr.rel (0) target = $region13
  $region12: #{actor_critic_forward.3} parent=0 // pred_region
    _
  $region13: #{actor_critic_forward.3} parent=0 // pred_fallthru
    _
  %v15 = vld [vmem:[%s0] sm:$0xff]
  %v16 = vld [vmem:[%s0 + $0x8] sm:$0xff]
  %v17 = vld [vmem:[%s0 + $0x10] sm:$0xff]
  %v18 = vld [vmem:[%s0 + $0x18] sm:$0xff]
  %v19 = vld [vmem:[%s0 + $0x20] sm:$0xff]
  %v20 = vld [vmem:[%s0 + $0x28] sm:$0xff]
  %v21 = vld [vmem:[%s0 + $0x30] sm:$0xff]
  %v22 = vld [vmem:[%s0 + $0x38] sm:$0xff]
  %v23 = vld [vmem:[%s0 + $0x40] sm:$0xff]
  %v24 = vld [vmem:[%s0 + $0x48] sm:$0xff]
  %v25 = vld [vmem:[%s0 + $0x50] sm:$0xff]
  %v26 = vld [vmem:[%s0 + $0x58] sm:$0xff]
  %v27 = vld [vmem:[%s0 + $0x60] sm:$0xff]
  %v28 = vld [vmem:[%s0 + $0x68] sm:$0xff]
  %v29 = vld [vmem:[%s0 + $0x70] sm:$0xff]
  %v30 = vld [vmem:[%s0 + $0x78] sm:$0xff]
  %v31 = vld [vmem:[%s0 + $0x80] sm:$0xff]
  %v32 = vld [vmem:[%s0 + $0x88] sm:$0xff]
  %v33 = vld [vmem:[%s0 + $0x90] sm:$0xff]
  %v34 = vld [vmem:[%s0 + $0x98] sm:$0xff]
  %v35 = vld [vmem:[%s0 + $0xa0] sm:$0xff]
  %v36 = vld [vmem:[%s1] sm:$0xf]
  %v37 = vld [vmem:[%s1 + $0x4] sm:$0xf]
  %v38 = vld [vmem:[%s1 + $0x8] sm:$0xf]
  %v39 = vld [vmem:[%s1 + $0xc] sm:$0xf]
  %v40 = vld [vmem:[%s1 + $0x10] sm:$0xf]
  %v41 = vld [vmem:[%s1 + $0x14] sm:$0xf]
  %v42 = vld [vmem:[%s1 + $0x18] sm:$0xf]
  %v43 = vld [vmem:[%s1 + $0x1c] sm:$0xf]
  %v44 = vld [vmem:[%s1 + $0x20] sm:$0xf]
  %v45 = vld [vmem:[%s1 + $0x24] sm:$0xf]
  %v46 = vld [vmem:[%s1 + $0x28] sm:$0xf]
  %v47 = vld [vmem:[%s1 + $0x2c] sm:$0xf]
  %v48 = vld [vmem:[%s1 + $0x30] sm:$0xf]
  %v49 = vld [vmem:[%s1 + $0x34] sm:$0xf]
  %v50 = vld [vmem:[%s1 + $0x38] sm:$0xf]
  %v51 = vld [vmem:[%s1 + $0x3c] sm:$0xf]
  %v52 = vld [vmem:[%s1 + $0x40] sm:$0xf]
  %v53 = vld [vmem:[%s1 + $0x44] sm:$0xf]
  %v54 = vld [vmem:[%s1 + $0x48] sm:$0xf]
  %v55 = vld [vmem:[%s1 + $0x4c] sm:$0xf]
  %v56 = vld [vmem:[%s1 + $0x50] sm:$0xf]
  %v57 = vld [vmem:[%s1 + $0x54] sm:$0xf]
  %v58 = vld [vmem:[%s1 + $0x58] sm:$0xf]
  %v59 = vld [vmem:[%s1 + $0x5c] sm:$0xf]
  %v60 = vld [vmem:[%s1 + $0x60] sm:$0xf]
  %v61 = vld [vmem:[%s1 + $0x64] sm:$0xf]
  %v62 = vld [vmem:[%s1 + $0x68] sm:$0xf]
  %v63 = vld [vmem:[%s1 + $0x6c] sm:$0xf]
  %v64 = vld [vmem:[%s1 + $0x70] sm:$0xf]
  %v65 = vld [vmem:[%s1 + $0x74] sm:$0xf]
  %v66 = vld [vmem:[%s1 + $0x78] sm:$0xf]
  %v67 = vld [vmem:[%s1 + $0x7c] sm:$0xf]
  %v68 = vld [vmem:[%s2] sm:$0x1]
  %v70 = vlaneseq
  %v71 = vshrl.u32 %v70, 7
  %v72 = vsub.s32 0, %v71
  %v73 = vrot.slane %v68, %v72
  %v96 = vunpack.c.l.b16 %v15
  %v97 = vunpack.c.h.b16 %v15
  %v98 = vunpack.c.l.b16 %v16
  %v99 = vunpack.c.h.b16 %v16
  %v100 = vunpack.c.l.b16 %v17
  %v101 = vunpack.c.h.b16 %v17
  %v102 = vunpack.c.l.b16 %v18
  %v103 = vunpack.c.h.b16 %v18
  %v104 = vunpack.c.l.b16 %v19
  %v105 = vunpack.c.h.b16 %v19
  %v106 = vunpack.c.l.b16 %v20
  %v107 = vunpack.c.h.b16 %v20
  %v108 = vunpack.c.l.b16 %v21
  %v109 = vunpack.c.h.b16 %v21
  %v110 = vunpack.c.l.b16 %v22
  %v111 = vunpack.c.h.b16 %v22
  %v112 = vunpack.c.l.b16 %v23
  %v113 = vunpack.c.h.b16 %v23
  %v114 = vunpack.c.l.b16 %v24
  %v115 = vunpack.c.h.b16 %v24
  %v116 = vunpack.c.l.b16 %v25
  %v117 = vunpack.c.h.b16 %v25
  %v118 = vunpack.c.l.b16 %v26
  %v119 = vunpack.c.h.b16 %v26
  %v120 = vunpack.c.l.b16 %v27
  %v121 = vunpack.c.h.b16 %v27
  %v122 = vunpack.c.l.b16 %v28
  %v123 = vunpack.c.h.b16 %v28
  %v124 = vunpack.c.l.b16 %v29
  %v125 = vunpack.c.h.b16 %v29
  %v126 = vunpack.c.l.b16 %v30
  %v127 = vunpack.c.h.b16 %v30
  %v128 = vunpack.c.l.b16 %v31
  %v129 = vunpack.c.h.b16 %v31
  %v130 = vunpack.c.l.b16 %v32
  %v131 = vunpack.c.h.b16 %v32
  %v132 = vunpack.c.l.b16 %v33
  %v133 = vunpack.c.h.b16 %v33
  %v134 = vunpack.c.l.b16 %v34
  %v135 = vunpack.c.h.b16 %v34
  %v136 = vunpack.c.l.b16 %v35
  %v137 = vunpack.c.h.b16 %v35
  %v138 = vpack.c.b16 %v98, %v96
  %v139 = vpack.c.b16 %v99, %v97
  %v140 = vpack.c.b16 %v102, %v100
  %v141 = vpack.c.b16 %v103, %v101
  %v142 = vpack.c.b16 %v106, %v104
  %v143 = vpack.c.b16 %v107, %v105
  %v144 = vpack.c.b16 %v110, %v108
  %v145 = vpack.c.b16 %v111, %v109
  %v146 = vpack.c.b16 %v114, %v112
  %v147 = vpack.c.b16 %v115, %v113
  %v148 = vpack.c.b16 %v118, %v116
  %v149 = vpack.c.b16 %v119, %v117
  %v150 = vpack.c.b16 %v122, %v120
  %v151 = vpack.c.b16 %v123, %v121
  %v152 = vpack.c.b16 %v126, %v124
  %v153 = vpack.c.b16 %v127, %v125
  %v154 = vpack.c.b16 %v130, %v128
  %v155 = vpack.c.b16 %v131, %v129
  %v156 = vpack.c.b16 %v134, %v132
  %v157 = vpack.c.b16 %v135, %v133
  %v158 = vpack.c.b16 %v136, %v136
  %v159 = vpack.c.b16 %v137, %v137
  %v214 = vunpack.c.l.b16 %v36
  %v215 = vunpack.c.l.b16 %v37
  %v216 = vunpack.c.l.b16 %v38
  %v217 = vunpack.c.l.b16 %v39
  %v218 = vunpack.c.l.b16 %v40
  %v219 = vunpack.c.l.b16 %v41
  %v220 = vunpack.c.l.b16 %v42
  %v221 = vunpack.c.l.b16 %v43
  %v222 = vunpack.c.l.b16 %v44
  %v223 = vunpack.c.l.b16 %v45
  %v224 = vunpack.c.l.b16 %v46
  %v225 = vunpack.c.l.b16 %v47
  %v226 = vunpack.c.l.b16 %v48
  %v227 = vunpack.c.l.b16 %v49
  %v228 = vunpack.c.l.b16 %v50
  %v229 = vunpack.c.l.b16 %v51
  %v230 = vunpack.c.l.b16 %v52
  %v231 = vunpack.c.l.b16 %v53
  %v232 = vunpack.c.l.b16 %v54
  %v233 = vunpack.c.l.b16 %v55
  %v234 = vunpack.c.l.b16 %v56
  %v235 = vunpack.c.l.b16 %v57
  %v236 = vunpack.c.l.b16 %v58
  %v237 = vunpack.c.l.b16 %v59
  %v238 = vunpack.c.l.b16 %v60
  %v239 = vunpack.c.l.b16 %v61
  %v240 = vunpack.c.l.b16 %v62
  %v241 = vunpack.c.l.b16 %v63
  %v242 = vunpack.c.l.b16 %v64
  %v243 = vunpack.c.l.b16 %v65
  %v244 = vunpack.c.l.b16 %v66
  %v245 = vunpack.c.l.b16 %v67
  %v246 = vpack.c.b16 %v215, %v214
  %v247 = vpack.c.b16 %v217, %v216
  %v248 = vpack.c.b16 %v219, %v218
  %v249 = vpack.c.b16 %v221, %v220
  %v250 = vpack.c.b16 %v223, %v222
  %v251 = vpack.c.b16 %v225, %v224
  %v252 = vpack.c.b16 %v227, %v226
  %v253 = vpack.c.b16 %v229, %v228
  %v254 = vpack.c.b16 %v231, %v230
  %v255 = vpack.c.b16 %v233, %v232
  %v256 = vpack.c.b16 %v235, %v234
  %v257 = vpack.c.b16 %v237, %v236
  %v258 = vpack.c.b16 %v239, %v238
  %v259 = vpack.c.b16 %v241, %v240
  %v260 = vpack.c.b16 %v243, %v242
  %v261 = vpack.c.b16 %v245, %v244
  %278 = vmatprep.subr.bf16.mxu0 0
  %279 = vmatpush1.bf16.msra.mxu0 %v246
  %280 = vmatprep.subr.bf16.mxu0 0
  %281 = vmatpush1.bf16.msra.mxu0 %v247
  %282 = vmatprep.subr.bf16.mxu0 0
  %283 = vmatpush1.bf16.msra.mxu0 %v248
  %284 = vmatprep.subr.bf16.mxu0 0
  %285 = vmatpush1.bf16.msra.mxu0 %v249
  %286 = vmatprep.subr.bf16.mxu0 0
  %287 = vmatpush1.bf16.msra.mxu0 %v250
  %288 = vmatprep.subr.bf16.mxu0 0
  %289 = vmatpush1.bf16.msra.mxu0 %v251
  %290 = vmatprep.subr.bf16.mxu0 0
  %291 = vmatpush1.bf16.msra.mxu0 %v252
  %292 = vmatprep.subr.bf16.mxu0 0
  %293 = vmatpush1.bf16.msra.mxu0 %v253
  %294 = vmatprep.subr.bf16.mxu0 0
  %295 = vmatpush1.bf16.msra.mxu0 %v254
  %296 = vmatprep.subr.bf16.mxu0 0
  %297 = vmatpush1.bf16.msra.mxu0 %v255
  %298 = vmatprep.subr.bf16.mxu0 0
  %299 = vmatpush1.bf16.msra.mxu0 %v256
  %300 = vmatprep.subr.bf16.mxu0 0
  %301 = vmatpush1.bf16.msra.mxu0 %v257
  %302 = vmatprep.subr.bf16.mxu0 0
  %303 = vmatpush1.bf16.msra.mxu0 %v258
  %304 = vmatprep.subr.bf16.mxu0 0
  %305 = vmatpush1.bf16.msra.mxu0 %v259
  %306 = vmatprep.subr.bf16.mxu0 0
  %307 = vmatpush1.bf16.msra.mxu0 %v260
  %308 = vmatprep.subr.bf16.mxu0 0
  %309 = vmatpush1.bf16.msra.mxu0 %v261
  %310 = vmatprep.mubr.bf16.mxu0 %v139
  %311 = vmatmul.mubr.bf16.gmra.mrb[0].mxu0 %v138
  %v312 = vpop.f32.mrb[0].mxu0
  %v313 = vadd.f32 %v73, %v312
  %v314 = vpop.f32.mrb[0].mxu0
  %v315 = vpop.f32.mrb[0].mxu0
  %v316 = vadd.f32 %v73, %v315
  %v317 = vpop.f32.mrb[0].mxu0
  %318 = vmatprep.mubr.bf16.mxu0 %v141
  %319 = vmatmul.mubr.bf16.gmra.mrb[0].mxu0 %v140
  %v320 = vpop.f32.mrb[0].mxu0
  %v321 = vadd.f32 %v73, %v320
  %v322 = vpop.f32.mrb[0].mxu0
  %v323 = vpop.f32.mrb[0].mxu0
  %v324 = vadd.f32 %v73, %v323
  %v325 = vpop.f32.mrb[0].mxu0
  %326 = vmatprep.mubr.bf16.mxu0 %v143
  %327 = vmatmul.mubr.bf16.gmra.mrb[0].mxu0 %v142
  %v328 = vpop.f32.mrb[0].mxu0
  %v329 = vadd.f32 %v73, %v328
  %v330 = vpop.f32.mrb[0].mxu0
  %v331 = vpop.f32.mrb[0].mxu0
  %v332 = vadd.f32 %v73, %v331
  %v333 = vpop.f32.mrb[0].mxu0
  %334 = vmatprep.mubr.bf16.mxu0 %v145
  %335 = vmatmul.mubr.bf16.gmra.mrb[0].mxu0 %v144
  %v336 = vpop.f32.mrb[0].mxu0
  %v337 = vadd.f32 %v73, %v336
  %v338 = vpop.f32.mrb[0].mxu0
  %v339 = vpop.f32.mrb[0].mxu0
  %v340 = vadd.f32 %v73, %v339
  %v341 = vpop.f32.mrb[0].mxu0
  %342 = vmatprep.mubr.bf16.mxu0 %v147
  %343 = vmatmul.mubr.bf16.gmra.mrb[0].mxu0 %v146
  %v344 = vpop.f32.mrb[0].mxu0
  %v345 = vadd.f32 %v73, %v344
  %v346 = vpop.f32.mrb[0].mxu0
  %v347 = vpop.f32.mrb[0].mxu0
  %v348 = vadd.f32 %v73, %v347
  %v349 = vpop.f32.mrb[0].mxu0
  %350 = vmatprep.mubr.bf16.mxu0 %v149
  %351 = vmatmul.mubr.bf16.gmra.mrb[0].mxu0 %v148
  %v352 = vpop.f32.mrb[0].mxu0
  %v353 = vadd.f32 %v73, %v352
  %v354 = vpop.f32.mrb[0].mxu0
  %v355 = vpop.f32.mrb[0].mxu0
  %v356 = vadd.f32 %v73, %v355
  %v357 = vpop.f32.mrb[0].mxu0
  %358 = vmatprep.mubr.bf16.mxu0 %v151
  %359 = vmatmul.mubr.bf16.gmra.mrb[0].mxu0 %v150
  %v360 = vpop.f32.mrb[0].mxu0
  %v361 = vadd.f32 %v73, %v360
  %v362 = vpop.f32.mrb[0].mxu0
  %v363 = vpop.f32.mrb[0].mxu0
  %v364 = vadd.f32 %v73, %v363
  %v365 = vpop.f32.mrb[0].mxu0
  %366 = vmatprep.mubr.bf16.mxu0 %v153
  %367 = vmatmul.mubr.bf16.gmra.mrb[0].mxu0 %v152
  %v368 = vpop.f32.mrb[0].mxu0
  %v369 = vadd.f32 %v73, %v368
  %v370 = vpop.f32.mrb[0].mxu0
  %v371 = vpop.f32.mrb[0].mxu0
  %v372 = vadd.f32 %v73, %v371
  %v373 = vpop.f32.mrb[0].mxu0
  %374 = vmatprep.mubr.bf16.mxu0 %v155
  %375 = vmatmul.mubr.bf16.gmra.mrb[0].mxu0 %v154
  %v376 = vpop.f32.mrb[0].mxu0
  %v377 = vadd.f32 %v73, %v376
  %v378 = vpop.f32.mrb[0].mxu0
  %v379 = vpop.f32.mrb[0].mxu0
  %v380 = vadd.f32 %v73, %v379
  %v381 = vpop.f32.mrb[0].mxu0
  %382 = vmatprep.mubr.bf16.mxu0 %v157
  %383 = vmatmul.mubr.bf16.gmra.mrb[0].mxu0 %v156
  %v384 = vpop.f32.mrb[0].mxu0
  %v385 = vadd.f32 %v73, %v384
  %v386 = vpop.f32.mrb[0].mxu0
  %v387 = vpop.f32.mrb[0].mxu0
  %v388 = vadd.f32 %v73, %v387
  %v389 = vpop.f32.mrb[0].mxu0
  %390 = vmatprep.mubr.bf16.mxu0 %v159
  %391 = vmatmul.mubr.bf16.gmra.mrb[0].mxu0 %v158
  %v392 = vpop.f32.mrb[0].mxu0
  %v393 = vadd.f32 %v73, %v392
  %v394 = vpop.f32.mrb[0].mxu0
  %v395 = vpop.f32.mrb[0].mxu0
  %v396 = vpop.f32.mrb[0].mxu0
  %397 = vdwg.mxu0
  %v398 = vmax.f32 %v313, 0.0
  %v399 = vmax.f32 %v316, 0.0
  %v400 = vmax.f32 %v321, 0.0
  %v401 = vmax.f32 %v324, 0.0
  %v402 = vmax.f32 %v329, 0.0
  %v403 = vmax.f32 %v332, 0.0
  %v404 = vmax.f32 %v337, 0.0
  %v405 = vmax.f32 %v340, 0.0
  %v406 = vmax.f32 %v345, 0.0
  %v407 = vmax.f32 %v348, 0.0
  %v408 = vmax.f32 %v353, 0.0
  %v409 = vmax.f32 %v356, 0.0
  %v410 = vmax.f32 %v361, 0.0
  %v411 = vmax.f32 %v364, 0.0
  %v412 = vmax.f32 %v369, 0.0
  %v413 = vmax.f32 %v372, 0.0
  %v414 = vmax.f32 %v377, 0.0
  %v415 = vmax.f32 %v380, 0.0
  %v416 = vmax.f32 %v385, 0.0
  %v417 = vmax.f32 %v388, 0.0
  %v418 = vmax.f32 %v393, 0.0
  %419 = vst [vmem:[%s3] sm:$0xff] %v398
  %420 = vst [vmem:[%s3 + $0x8] sm:$0xff] %v399
  %421 = vst [vmem:[%s3 + $0x10] sm:$0xff] %v400
  %422 = vst [vmem:[%s3 + $0x18] sm:$0xff] %v401
  %423 = vst [vmem:[%s3 + $0x20] sm:$0xff] %v402
  %424 = vst [vmem:[%s3 + $0x28] sm:$0xff] %v403
  %425 = vst [vmem:[%s3 + $0x30] sm:$0xff] %v404
  %426 = vst [vmem:[%s3 + $0x38] sm:$0xff] %v405
  %427 = vst [vmem:[%s3 + $0x40] sm:$0xff] %v406
  %428 = vst [vmem:[%s3 + $0x48] sm:$0xff] %v407
  %429 = vst [vmem:[%s3 + $0x50] sm:$0xff] %v408
  %430 = vst [vmem:[%s3 + $0x58] sm:$0xff] %v409
  %431 = vst [vmem:[%s3 + $0x60] sm:$0xff] %v410
  %432 = vst [vmem:[%s3 + $0x68] sm:$0xff] %v411
  %433 = vst [vmem:[%s3 + $0x70] sm:$0xff] %v412
  %434 = vst [vmem:[%s3 + $0x78] sm:$0xff] %v413
  %435 = vst [vmem:[%s3 + $0x80] sm:$0xff] %v414
  %436 = vst [vmem:[%s3 + $0x88] sm:$0xff] %v415
  %437 = vst [vmem:[%s3 + $0x90] sm:$0xff] %v416
  %438 = vst [vmem:[%s3 + $0x98] sm:$0xff] %v417
  %439 = vst [vmem:[%s3 + $0xa0] sm:$0xff] %v418
  // Predicated region
  $region14: #{actor_critic_forward.3} parent=0 // pred_check
    _
  $region15: #{actor_critic_forward.3} parent=0 // pred_check_branch
    %441 = sbr.rel (0) target = $region17
  $region16: #{actor_critic_forward.3} parent=0 // pred_region
    _
  $region17: #{actor_critic_forward.3} parent=0 // pred_fallthru
    _
  // Predicated region
  $region18: #{actor_critic_forward.3} parent=0 // pred_check
    _
  $region19: #{actor_critic_forward.3} parent=0 // pred_check_branch
    %443 = sbr.rel (0) target = $region21
  $region20: #{actor_critic_forward.3} parent=0 // pred_region
    _
  $region21: #{actor_critic_forward.3} parent=0 // pred_fallthru
    _

// kernel: actor_critic_forward.5
$region0: #{actor_critic_forward.5}
  #allocation0 [shape = 'u32[]', space=smem, size = 0x4, offset = 0x4, fixed_abs, tag = 'smem constant byte address 0x4 - core index']
  #allocation1 [shape = 'u32[144,128]{1,0:T(1,128)}', space=vmem, size = 0x12000, scoped, tag = 'internal scratch']
  %s0 = inlined_call_operand.vmem [shape: bf16[8,576], index: 0, kind: input, shape index: {}]
  %s1 = inlined_call_operand.vmem [shape: bf16[576,64], index: 1, kind: input, shape index: {}]
  %s2 = inlined_call_operand.vmem [shape: f32[1,64], index: 2, kind: input, shape index: {}]
  %s3 = inlined_call_operand.vmem [shape: bf16[64,384], index: 3, kind: input, shape index: {}]
  %s4 = inlined_call_operand.vmem [shape: f32[1,384], index: 4, kind: input, shape index: {}]
  %s5 = inlined_call_operand.vmem [shape: bf16[384,128], index: 5, kind: input, shape index: {}]
  %s6 = inlined_call_operand.vmem [shape: f32[1,128], index: 6, kind: input, shape index: {}]
  %s7 = inlined_call_operand.vmem [shape: f32[8,128], index: 7, kind: output, shape index: {}]
  %s8 = sld [smem:[#allocation0]]
  $region38: #{actor_critic_forward.5} parent=0
    _
  %s10 = ssub.s32 1, %s8
  %s11 = scalar_select 0, %s10, %s8
  // Predicated region
  $region2: #{actor_critic_forward.5} parent=0 // pred_check
    _
  $region3: #{actor_critic_forward.5} parent=0 // pred_check_branch
    %13 = sbr.rel (0) target = $region5
  $region4: #{actor_critic_forward.5} parent=0 // pred_region
    _
  $region5: #{actor_critic_forward.5} parent=0 // pred_fallthru
    _
  // Predicated region
  $region6: #{actor_critic_forward.5} parent=0 // pred_check
    _
  $region7: #{actor_critic_forward.5} parent=0 // pred_check_branch
    %15 = sbr.rel (0) target = $region9
  $region8: #{actor_critic_forward.5} parent=0 // pred_region
    _
  $region9: #{actor_critic_forward.5} parent=0 // pred_fallthru
    _
  // Predicated region
  $region10: #{actor_critic_forward.5} parent=0 // pred_check
    _
  $region11: #{actor_critic_forward.5} parent=0 // pred_check_branch
    %17 = sbr.rel (0) target = $region13
  $region12: #{actor_critic_forward.5} parent=0 // pred_region
    _
  $region13: #{actor_critic_forward.5} parent=0 // pred_fallthru
    _
  // Predicated region
  $region14: #{actor_critic_forward.5} parent=0 // pred_check
    _
  $region15: #{actor_critic_forward.5} parent=0 // pred_check_branch
    %19 = sbr.rel (0) target = $region17
  $region16: #{actor_critic_forward.5} parent=0 // pred_region
    _
  $region17: #{actor_critic_forward.5} parent=0 // pred_fallthru
    _
  // Predicated region
  $region18: #{actor_critic_forward.5} parent=0 // pred_check
    _
  $region19: #{actor_critic_forward.5} parent=0 // pred_check_branch
    %21 = sbr.rel (0) target = $region21
  $region20: #{actor_critic_forward.5} parent=0 // pred_region
    _
  $region21: #{actor_critic_forward.5} parent=0 // pred_fallthru
    _
  // Predicated region
  $region22: #{actor_critic_forward.5} parent=0 // pred_check
    _
  $region23: #{actor_critic_forward.5} parent=0 // pred_check_branch
    %23 = sbr.rel (0) target = $region25
  $region24: #{actor_critic_forward.5} parent=0 // pred_region
    _
  $region25: #{actor_critic_forward.5} parent=0 // pred_fallthru
    _
  // Predicated region
  $region26: #{actor_critic_forward.5} parent=0 // pred_check
    _
  $region27: #{actor_critic_forward.5} parent=0 // pred_check_branch
    %25 = sbr.rel (0) target = $region29
  $region28: #{actor_critic_forward.5} parent=0 // pred_region
    _
  $region29: #{actor_critic_forward.5} parent=0 // pred_fallthru
    _
  %v27 = vld [vmem:[%s0] sm:$0xff]
  %v28 = vld [vmem:[%s0 + $0x8] sm:$0xff]
  %v29 = vld [vmem:[%s0 + $0x10] sm:$0xf]
  %v30 = vld [vmem:[%s1] sm:$0xf]
  %v31 = vld [vmem:[%s1 + $0x4] sm:$0xf]
  %v32 = vld [vmem:[%s1 + $0x8] sm:$0xf]
  %v33 = vld [vmem:[%s1 + $0xc] sm:$0xf]
  %v34 = vld [vmem:[%s1 + $0x10] sm:$0xf]
  %v35 = vld [vmem:[%s1 + $0x14] sm:$0xf]
  %v36 = vld [vmem:[%s1 + $0x18] sm:$0xf]
  %v37 = vld [vmem:[%s1 + $0x1c] sm:$0xf]
  %v38 = vld [vmem:[%s1 + $0x20] sm:$0xf]
  %v39 = vld [vmem:[%s1 + $0x24] sm:$0xf]
  %v40 = vld [vmem:[%s1 + $0x28] sm:$0xf]
  %v41 = vld [vmem:[%s1 + $0x2c] sm:$0xf]
  %v42 = vld [vmem:[%s1 + $0x30] sm:$0xf]
  %v43 = vld [vmem:[%s1 + $0x34] sm:$0xf]
  %v44 = vld [vmem:[%s1 + $0x38] sm:$0xf]
  %v45 = vld [vmem:[%s1 + $0x3c] sm:$0xf]
  %v46 = vld [vmem:[%s1 + $0x40] sm:$0xf]
  %v47 = vld [vmem:[%s1 + $0x44] sm:$0xf]
  %v48 = vld [vmem:[%s1 + $0x48] sm:$0xf]
  %v49 = vld [vmem:[%s1 + $0x4c] sm:$0xf]
  %v50 = vld [vmem:[%s1 + $0x50] sm:$0xf]
  %v51 = vld [vmem:[%s1 + $0x54] sm:$0xf]
  %v52 = vld [vmem:[%s1 + $0x58] sm:$0xf]
  %v53 = vld [vmem:[%s1 + $0x5c] sm:$0xf]
  %v54 = vld [vmem:[%s1 + $0x60] sm:$0xf]
  %v55 = vld [vmem:[%s1 + $0x64] sm:$0xf]
  %v56 = vld [vmem:[%s1 + $0x68] sm:$0xf]
  %v57 = vld [vmem:[%s1 + $0x6c] sm:$0xf]
  %v58 = vld [vmem:[%s1 + $0x70] sm:$0xf]
  %v59 = vld [vmem:[%s1 + $0x74] sm:$0xf]
  %v60 = vld [vmem:[%s1 + $0x78] sm:$0xf]
  %v61 = vld [vmem:[%s1 + $0x7c] sm:$0xf]
  %v62 = vld [vmem:[%s1 + $0x80] sm:$0xf]
  %v63 = vld [vmem:[%s1 + $0x84] sm:$0xf]
  %v64 = vld [vmem:[%s1 + $0x88] sm:$0xf]
  %v65 = vld [vmem:[%s1 + $0x8c] sm:$0xf]
  %v66 = vld [vmem:[%s1 + $0x90] sm:$0xf]
  %v67 = vld [vmem:[%s1 + $0x94] sm:$0xf]
  %v68 = vld [vmem:[%s1 + $0x98] sm:$0xf]
  %v69 = vld [vmem:[%s1 + $0x9c] sm:$0xf]
  %v70 = vld [vmem:[%s1 + $0xa0] sm:$0xf]
  %v71 = vld [vmem:[%s1 + $0xa4] sm:$0xf]
  %v72 = vld [vmem:[%s1 + $0xa8] sm:$0xf]
  %v73 = vld [vmem:[%s1 + $0xac] sm:$0xf]
  %v74 = vld [vmem:[%s1 + $0xb0] sm:$0xf]
  %v75 = vld [vmem:[%s1 + $0xb4] sm:$0xf]
  %v76 = vld [vmem:[%s1 + $0xb8] sm:$0xf]
  %v77 = vld [vmem:[%s1 + $0xbc] sm:$0xf]
  %v78 = vld [vmem:[%s1 + $0xc0] sm:$0xf]
  %v79 = vld [vmem:[%s1 + $0xc4] sm:$0xf]
  %v80 = vld [vmem:[%s1 + $0xc8] sm:$0xf]
  %v81 = vld [vmem:[%s1 + $0xcc] sm:$0xf]
  %v82 = vld [vmem:[%s1 + $0xd0] sm:$0xf]
  %v83 = vld [vmem:[%s1 + $0xd4] sm:$0xf]
  %v84 = vld [vmem:[%s1 + $0xd8] sm:$0xf]
  %v85 = vld [vmem:[%s1 + $0xdc] sm:$0xf]
  %v86 = vld [vmem:[%s1 + $0xe0] sm:$0xf]
  %v87 = vld [vmem:[%s1 + $0xe4] sm:$0xf]
  %v88 = vld [vmem:[%s1 + $0xe8] sm:$0xf]
  %v89 = vld [vmem:[%s1 + $0xec] sm:$0xf]
  %v90 = vld [vmem:[%s1 + $0xf0] sm:$0xf]
  %v91 = vld [vmem:[%s1 + $0xf4] sm:$0xf]
  %v92 = vld [vmem:[%s1 + $0xf8] sm:$0xf]
  %v93 = vld [vmem:[%s1 + $0xfc] sm:$0xf]
  %v94 = vld [vmem:[%s1 + $0x100] sm:$0xf]
  %v95 = vld [vmem:[%s1 + $0x104] sm:$0xf]
  %v96 = vld [vmem:[%s1 + $0x108] sm:$0xf]
  %v97 = vld [vmem:[%s1 + $0x10c] sm:$0xf]
  %v98 = vld [vmem:[%s1 + $0x110] sm:$0xf]
  %v99 = vld [vmem:[%s1 + $0x114] sm:$0xf]
  %v100 = vld [vmem:[%s1 + $0x118] sm:$0xf]
  %v101 = vld [vmem:[%s1 + $0x11c] sm:$0xf]
  %v102 = vld [vmem:[%s2] sm:$0x1]
  %v104 = vlaneseq
  %v105 = vshrl.u32 %v104, 7
  %v106 = vsub.s32 0, %v105
  %v107 = vrot.slane %v102, %v106
  %v112 = vunpack.c.l.b16 %v27
  %v113 = vunpack.c.h.b16 %v27
  %v114 = vunpack.c.l.b16 %v28
  %v115 = vunpack.c.h.b16 %v28
  %v116 = vunpack.c.l.b16 %v29
  %v117 = vpack.c.b16 %v112, %v112
  %v118 = vpack.c.b16 %v113, %v113
  %v119 = vpack.c.b16 %v114, %v114
  %v120 = vpack.c.b16 %v115, %v115
  %v121 = vpack.c.b16 %v116, %v116
  %v198 = vunpack.c.l.b16 %v30
  %v199 = vunpack.c.l.b16 %v31
  %v200 = vunpack.c.l.b16 %v32
  %v201 = vunpack.c.l.b16 %v33
  %v202 = vunpack.c.l.b16 %v34
  %v203 = vunpack.c.l.b16 %v35
  %v204 = vunpack.c.l.b16 %v36
  %v205 = vunpack.c.l.b16 %v37
  %v206 = vunpack.c.l.b16 %v38
  %v207 = vunpack.c.l.b16 %v39
  %v208 = vunpack.c.l.b16 %v40
  %v209 = vunpack.c.l.b16 %v41
  %v210 = vunpack.c.l.b16 %v42
  %v211 = vunpack.c.l.b16 %v43
  %v212 = vunpack.c.l.b16 %v44
  %v213 = vunpack.c.l.b16 %v45
  %v214 = vunpack.c.l.b16 %v46
  %v215 = vunpack.c.l.b16 %v47
  %v216 = vunpack.c.l.b16 %v48
  %v217 = vunpack.c.l.b16 %v49
  %v218 = vunpack.c.l.b16 %v50
  %v219 = vunpack.c.l.b16 %v51
  %v220 = vunpack.c.l.b16 %v52
  %v221 = vunpack.c.l.b16 %v53
  %v222 = vunpack.c.l.b16 %v54
  %v223 = vunpack.c.l.b16 %v55
  %v224 = vunpack.c.l.b16 %v56
  %v225 = vunpack.c.l.b16 %v57
  %v226 = vunpack.c.l.b16 %v58
  %v227 = vunpack.c.l.b16 %v59
  %v228 = vunpack.c.l.b16 %v60
  %v229 = vunpack.c.l.b16 %v61
  %v230 = vunpack.c.l.b16 %v62
  %v231 = vunpack.c.l.b16 %v63
  %v232 = vunpack.c.l.b16 %v64
  %v233 = vunpack.c.l.b16 %v65
  %v234 = vunpack.c.l.b16 %v66
  %v235 = vunpack.c.l.b16 %v67
  %v236 = vunpack.c.l.b16 %v68
  %v237 = vunpack.c.l.b16 %v69
  %v238 = vunpack.c.l.b16 %v70
  %v239 = vunpack.c.l.b16 %v71
  %v240 = vunpack.c.l.b16 %v72
  %v241 = vunpack.c.l.b16 %v73
  %v242 = vunpack.c.l.b16 %v74
  %v243 = vunpack.c.l.b16 %v75
  %v244 = vunpack.c.l.b16 %v76
  %v245 = vunpack.c.l.b16 %v77
  %v246 = vunpack.c.l.b16 %v78
  %v247 = vunpack.c.l.b16 %v79
  %v248 = vunpack.c.l.b16 %v80
  %v249 = vunpack.c.l.b16 %v81
  %v250 = vunpack.c.l.b16 %v82
  %v251 = vunpack.c.l.b16 %v83
  %v252 = vunpack.c.l.b16 %v84
  %v253 = vunpack.c.l.b16 %v85
  %v254 = vunpack.c.l.b16 %v86
  %v255 = vunpack.c.l.b16 %v87
  %v256 = vunpack.c.l.b16 %v88
  %v257 = vunpack.c.l.b16 %v89
  %v258 = vunpack.c.l.b16 %v90
  %v259 = vunpack.c.l.b16 %v91
  %v260 = vunpack.c.l.b16 %v92
  %v261 = vunpack.c.l.b16 %v93
  %v262 = vunpack.c.l.b16 %v94
  %v263 = vunpack.c.l.b16 %v95
  %v264 = vunpack.c.l.b16 %v96
  %v265 = vunpack.c.l.b16 %v97
  %v266 = vunpack.c.l.b16 %v98
  %v267 = vunpack.c.l.b16 %v99
  %v268 = vunpack.c.l.b16 %v100
  %v269 = vunpack.c.l.b16 %v101
  %v270 = vpack.c.b16 %v199, %v198
  %v271 = vpack.c.b16 %v201, %v200
  %v272 = vpack.c.b16 %v203, %v202
  %v273 = vpack.c.b16 %v205, %v204
  %v274 = vpack.c.b16 %v207, %v206
  %v275 = vpack.c.b16 %v209, %v208
  %v276 = vpack.c.b16 %v211, %v210
  %v277 = vpack.c.b16 %v213, %v212
  %v278 = vpack.c.b16 %v215, %v214
  %v279 = vpack.c.b16 %v217, %v216
  %v280 = vpack.c.b16 %v219, %v218
  %v281 = vpack.c.b16 %v221, %v220
  %v282 = vpack.c.b16 %v223, %v222
  %v283 = vpack.c.b16 %v225, %v224
  %v284 = vpack.c.b16 %v227, %v226
  %v285 = vpack.c.b16 %v229, %v228
  %v286 = vpack.c.b16 %v231, %v230
  %v287 = vpack.c.b16 %v233, %v232
  %v288 = vpack.c.b16 %v235, %v234
  %v289 = vpack.c.b16 %v237, %v236
  %v290 = vpack.c.b16 %v239, %v238
  %v291 = vpack.c.b16 %v241, %v240
  %v292 = vpack.c.b16 %v243, %v242
  %v293 = vpack.c.b16 %v245, %v244
  %v294 = vpack.c.b16 %v247, %v246
  %v295 = vpack.c.b16 %v249, %v248
  %v296 = vpack.c.b16 %v251, %v250
  %v297 = vpack.c.b16 %v253, %v252
  %v298 = vpack.c.b16 %v255, %v254
  %v299 = vpack.c.b16 %v257, %v256
  %v300 = vpack.c.b16 %v259, %v258
  %v301 = vpack.c.b16 %v261, %v260
  %v302 = vpack.c.b16 %v263, %v262
  %v303 = vpack.c.b16 %v265, %v264
  %v304 = vpack.c.b16 %v267, %v266
  %v305 = vpack.c.b16 %v269, %v268
  %vm342 = vcmask 523264
  %v344 = vsel %vm342, %v121, 0
  %346 = vmatprep.subr.bf16.mxu0 0
  %347 = vmatpush1.bf16.msra.mxu0 %v270
  %348 = vmatprep.subr.bf16.mxu0 0
  %349 = vmatpush1.bf16.msra.mxu0 %v271
  %350 = vmatprep.subr.bf16.mxu0 0
  %351 = vmatpush1.bf16.msra.mxu0 %v272
  %352 = vmatprep.subr.bf16.mxu0 0
  %353 = vmatpush1.bf16.msra.mxu0 %v273
  %354 = vmatprep.subr.bf16.mxu0 0
  %355 = vmatpush1.bf16.msra.mxu0 %v274
  %356 = vmatprep.subr.bf16.mxu0 0
  %357 = vmatpush1.bf16.msra.mxu0 %v275
  %358 = vmatprep.subr.bf16.mxu0 0
  %359 = vmatpush1.bf16.msra.mxu0 %v276
  %360 = vmatprep.subr.bf16.mxu0 0
  %361 = vmatpush1.bf16.msra.mxu0 %v277
  %362 = vmatprep.subr.bf16.mxu0 0
  %363 = vmatpush1.bf16.msra.mxu0 %v278
  %364 = vmatprep.subr.bf16.mxu0 0
  %365 = vmatpush1.bf16.msra.mxu0 %v279
  %366 = vmatprep.subr.bf16.mxu0 0
  %367 = vmatpush1.bf16.msra.mxu0 %v280
  %368 = vmatprep.subr.bf16.mxu0 0
  %369 = vmatpush1.bf16.msra.mxu0 %v281
  %370 = vmatprep.subr.bf16.mxu0 0
  %371 = vmatpush1.bf16.msra.mxu0 %v282
  %372 = vmatprep.subr.bf16.mxu0 0
  %373 = vmatpush1.bf16.msra.mxu0 %v283
  %374 = vmatprep.subr.bf16.mxu0 0
  %375 = vmatpush1.bf16.msra.mxu0 %v284
  %376 = vmatprep.subr.bf16.mxu0 0
  %377 = vmatpush1.bf16.msra.mxu0 %v285
  %378 = vmatprep.mubr.bf16.mxu0 %v118
  %379 = vmatmul.mubr.bf16.gmra.mrb[0].mxu0 %v117
  %v380 = vpop.f32.mrb[0].mxu0
  %v381 = vadd.f32 %v107, %v380
  %v382 = vpop.f32.mrb[0].mxu0
  %v383 = vpop.f32.mrb[0].mxu0
  %v384 = vpop.f32.mrb[0].mxu0
  %385 = vdwg.mxu0
  %386 = vmatprep.subr.bf16.mxu0 0
  %387 = vmatpush1.bf16.msra.mxu0 %v286
  %388 = vmatprep.subr.bf16.mxu0 0
  %389 = vmatpush1.bf16.msra.mxu0 %v287
  %390 = vmatprep.subr.bf16.mxu0 0
  %391 = vmatpush1.bf16.msra.mxu0 %v288
  %392 = vmatprep.subr.bf16.mxu0 0
  %393 = vmatpush1.bf16.msra.mxu0 %v289
  %394 = vmatprep.subr.bf16.mxu0 0
  %395 = vmatpush1.bf16.msra.mxu0 %v290
  %396 = vmatprep.subr.bf16.mxu0 0
  %397 = vmatpush1.bf16.msra.mxu0 %v291
  %398 = vmatprep.subr.bf16.mxu0 0
  %399 = vmatpush1.bf16.msra.mxu0 %v292
  %400 = vmatprep.subr.bf16.mxu0 0
  %401 = vmatpush1.bf16.msra.mxu0 %v293
  %402 = vmatprep.subr.bf16.mxu0 0
  %403 = vmatpush1.bf16.msra.mxu0 %v294
  %404 = vmatprep.subr.bf16.mxu0 0
  %405 = vmatpush1.bf16.msra.mxu0 %v295
  %406 = vmatprep.subr.bf16.mxu0 0
  %407 = vmatpush1.bf16.msra.mxu0 %v296
  %408 = vmatprep.subr.bf16.mxu0 0
  %409 = vmatpush1.bf16.msra.mxu0 %v297
  %410 = vmatprep.subr.bf16.mxu0 0
  %411 = vmatpush1.bf16.msra.mxu0 %v298
  %412 = vmatprep.subr.bf16.mxu0 0
  %413 = vmatpush1.bf16.msra.mxu0 %v299
  %414 = vmatprep.subr.bf16.mxu0 0
  %415 = vmatpush1.bf16.msra.mxu0 %v300
  %416 = vmatprep.subr.bf16.mxu0 0
  %417 = vmatpush1.bf16.msra.mxu0 %v301
  %418 = vmatprep.mubr.bf16.mxu0 %v120
  %419 = vmatmul.mubr.bf16.gmra.mrb[0].mxu0 %v119
  %v420 = vpop.f32.mrb[0].mxu0
  %v421 = vadd.f32 %v381, %v420
  %v422 = vpop.f32.mrb[0].mxu0
  %v423 = vpop.f32.mrb[0].mxu0
  %v424 = vpop.f32.mrb[0].mxu0
  %425 = vdwg.mxu0
  %426 = vmatprep.subr.bf16.mxu0 0
  %427 = vmatpush1.bf16.msra.mxu0 %v302
  %428 = vmatprep.subr.bf16.mxu0 0
  %429 = vmatpush1.bf16.msra.mxu0 %v303
  %430 = vmatprep.subr.bf16.mxu0 0
  %431 = vmatpush1.bf16.msra.mxu0 %v304
  %432 = vmatprep.subr.bf16.mxu0 0
  %433 = vmatpush1.bf16.msra.mxu0 %v305
  %434 = vmatprep.subr.bf16.mxu0 0
  %435 = vmatpush1.bf16.msra.mxu0 0
  %436 = vmatprep.subr.bf16.mxu0 0
  %437 = vmatpush1.bf16.msra.mxu0 0
  %438 = vmatprep.subr.bf16.mxu0 0
  %439 = vmatpush1.bf16.msra.mxu0 0
  %440 = vmatprep.subr.bf16.mxu0 0
  %441 = vmatpush1.bf16.msra.mxu0 0
  %442 = vmatprep.subr.bf16.mxu0 0
  %443 = vmatpush1.bf16.msra.mxu0 0
  %444 = vmatprep.subr.bf16.mxu0 0
  %445 = vmatpush1.bf16.msra.mxu0 0
  %446 = vmatprep.subr.bf16.mxu0 0
  %447 = vmatpush1.bf16.msra.mxu0 0
  %448 = vmatprep.subr.bf16.mxu0 0
  %449 = vmatpush1.bf16.msra.mxu0 0
  %450 = vmatprep.subr.bf16.mxu0 0
  %451 = vmatpush1.bf16.msra.mxu0 0
  %452 = vmatprep.subr.bf16.mxu0 0
  %453 = vmatpush1.bf16.msra.mxu0 0
  %454 = vmatprep.subr.bf16.mxu0 0
  %455 = vmatpush1.bf16.msra.mxu0 0
  %456 = vmatprep.subr.bf16.mxu0 0
  %457 = vmatpush1.bf16.msra.mxu0 0
  %458 = vmatprep.mubr.bf16.mxu0 0
  %459 = vmatmul.mubr.bf16.gmra.mrb[0].mxu0 %v344
  %v460 = vpop.f32.mrb[0].mxu0
  %v461 = vadd.f32 %v421, %v460
  %v462 = vpop.f32.mrb[0].mxu0
  %v463 = vpop.f32.mrb[0].mxu0
  %v464 = vpop.f32.mrb[0].mxu0
  %465 = vdwg.mxu0
  %v466 = vmax.f32 %v461, 0.0
  %v467 = vpack.c.bf16 %v466, %v466
  %v468 = vld [vmem:[%s3] sm:$0xff]
  %v469 = vld [vmem:[%s3 + $0x8] sm:$0xf]
  %v470 = vld [vmem:[%s3 + $0xc] sm:$0xff]
  %v471 = vld [vmem:[%s3 + $0x14] sm:$0xf]
  %v472 = vld [vmem:[%s3 + $0x18] sm:$0xff]
  %v473 = vld [vmem:[%s3 + $0x20] sm:$0xf]
  %v474 = vld [vmem:[%s3 + $0x24] sm:$0xff]
  %v475 = vld [vmem:[%s3 + $0x2c] sm:$0xf]
  %v476 = vld [vmem:[%s3 + $0x30] sm:$0xff]
  %v477 = vld [vmem:[%s3 + $0x38] sm:$0xf]
  %v478 = vld [vmem:[%s3 + $0x3c] sm:$0xff]
  %v479 = vld [vmem:[%s3 + $0x44] sm:$0xf]
  %v480 = vld [vmem:[%s3 + $0x48] sm:$0xff]
  %v481 = vld [vmem:[%s3 + $0x50] sm:$0xf]
  %v482 = vld [vmem:[%s3 + $0x54] sm:$0xff]
  %v483 = vld [vmem:[%s3 + $0x5c] sm:$0xf]
  %v484 = vld [vmem:[%s4] sm:$0x7]
  %v486 = vlaneseq
  %v487 = vshrl.u32 %v486, 7
  %v488 = vsub.s32 0, %v487
  %v489 = vrot.slane %v484, %v488
  %v490 = vlaneseq
  %v491 = vshrl.u32 %v490, 7
  %v492 = vsub.s32 1, %v491
  %v493 = vrot.slane %v484, %v492
  %v494 = vlaneseq
  %v495 = vshrl.u32 %v494, 7
  %v496 = vsub.s32 2, %v495
  %v497 = vrot.slane %v484, %v496
  %v517 = vunpack.c.l.b16 %v468
  %v518 = vunpack.c.h.b16 %v468
  %v519 = vunpack.c.l.b16 %v469
  %v520 = vunpack.c.l.b16 %v470
  %v521 = vunpack.c.h.b16 %v470
  %v522 = vunpack.c.l.b16 %v471
  %v523 = vunpack.c.l.b16 %v472
  %v524 = vunpack.c.h.b16 %v472
  %v525 = vunpack.c.l.b16 %v473
  %v526 = vunpack.c.l.b16 %v474
  %v527 = vunpack.c.h.b16 %v474
  %v528 = vunpack.c.l.b16 %v475
  %v529 = vunpack.c.l.b16 %v476
  %v530 = vunpack.c.h.b16 %v476
  %v531 = vunpack.c.l.b16 %v477
  %v532 = vunpack.c.l.b16 %v478
  %v533 = vunpack.c.h.b16 %v478
  %v534 = vunpack.c.l.b16 %v479
  %v535 = vunpack.c.l.b16 %v480
  %v536 = vunpack.c.h.b16 %v480
  %v537 = vunpack.c.l.b16 %v481
  %v538 = vunpack.c.l.b16 %v482
  %v539 = vunpack.c.h.b16 %v482
  %v540 = vunpack.c.l.b16 %v483
  %v541 = vpack.c.b16 %v520, %v517
  %v542 = vpack.c.b16 %v521, %v518
  %v543 = vpack.c.b16 %v522, %v519
  %v544 = vpack.c.b16 %v526, %v523
  %v545 = vpack.c.b16 %v527, %v524
  %v546 = vpack.c.b16 %v528, %v525
  %v547 = vpack.c.b16 %v532, %v529
  %v548 = vpack.c.b16 %v533, %v530
  %v549 = vpack.c.b16 %v534, %v531
  %v550 = vpack.c.b16 %v538, %v535
  %v551 = vpack.c.b16 %v539, %v536
  %v552 = vpack.c.b16 %v540, %v537
  %v566 = vsel %vm342, %v467, 0
  %568 = vmatprep.subr.bf16.mxu0 %v542
  %569 = vmatpush1.bf16.msra.mxu0 %v541
  %570 = vmatprep.subr.bf16.mxu0 %v545
  %571 = vmatpush1.bf16.msra.mxu0 %v544
  %572 = vmatprep.subr.bf16.mxu0 %v548
  %573 = vmatpush1.bf16.msra.mxu0 %v547
  %574 = vmatprep.subr.bf16.mxu0 %v551
  %575 = vmatpush1.bf16.msra.mxu0 %v550
  %576 = vmatprep.subr.bf16.mxu0 0
  %577 = vmatpush1.bf16.msra.mxu0 0
  %578 = vmatprep.subr.bf16.mxu0 0
  %579 = vmatpush1.bf16.msra.mxu0 0
  %580 = vmatprep.subr.bf16.mxu0 0
  %581 = vmatpush1.bf16.msra.mxu0 0
  %582 = vmatprep.subr.bf16.mxu0 0
  %583 = vmatpush1.bf16.msra.mxu0 0
  %584 = vmatprep.subr.bf16.mxu0 0
  %585 = vmatpush1.bf16.msra.mxu0 0
  %586 = vmatprep.subr.bf16.mxu0 0
  %587 = vmatpush1.bf16.msra.mxu0 0
  %588 = vmatprep.subr.bf16.mxu0 0
  %589 = vmatpush1.bf16.msra.mxu0 0
  %590 = vmatprep.subr.bf16.mxu0 0
  %591 = vmatpush1.bf16.msra.mxu0 0
  %592 = vmatprep.subr.bf16.mxu0 0
  %593 = vmatpush1.bf16.msra.mxu0 0
  %594 = vmatprep.subr.bf16.mxu0 0
  %595 = vmatpush1.bf16.msra.mxu0 0
  %596 = vmatprep.subr.bf16.mxu0 0
  %597 = vmatpush1.bf16.msra.mxu0 0
  %598 = vmatprep.subr.bf16.mxu0 0
  %599 = vmatpush1.bf16.msra.mxu0 0
  %600 = vmatprep.mubr.bf16.mxu0 0
  %601 = vmatmul.mubr.bf16.gmra.mrb[0].mxu0 %v566
  %v602 = vpop.f32.mrb[0].mxu0
  %v603 = vadd.f32 %v489, %v602
  %v604 = vpop.f32.mrb[0].mxu0
  %v605 = vadd.f32 %v493, %v604
  %v606 = vpop.f32.mrb[0].mxu0
  %v607 = vpop.f32.mrb[0].mxu0
  %608 = vdwg.mxu0
  %609 = vmatprep.subr.bf16.mxu0 0
  %610 = vmatpush1.bf16.msra.mxu0 %v543
  %611 = vmatprep.subr.bf16.mxu0 0
  %612 = vmatpush1.bf16.msra.mxu0 %v546
  %613 = vmatprep.subr.bf16.mxu0 0
  %614 = vmatpush1.bf16.msra.mxu0 %v549
  %615 = vmatprep.subr.bf16.mxu0 0
  %616 = vmatpush1.bf16.msra.mxu0 %v552
  %617 = vmatprep.subr.bf16.mxu0 0
  %618 = vmatpush1.bf16.msra.mxu0 0
  %619 = vmatprep.subr.bf16.mxu0 0
  %620 = vmatpush1.bf16.msra.mxu0 0
  %621 = vmatprep.subr.bf16.mxu0 0
  %622 = vmatpush1.bf16.msra.mxu0 0
  %623 = vmatprep.subr.bf16.mxu0 0
  %624 = vmatpush1.bf16.msra.mxu0 0
  %625 = vmatprep.subr.bf16.mxu0 0
  %626 = vmatpush1.bf16.msra.mxu0 0
  %627 = vmatprep.subr.bf16.mxu0 0
  %628 = vmatpush1.bf16.msra.mxu0 0
  %629 = vmatprep.subr.bf16.mxu0 0
  %630 = vmatpush1.bf16.msra.mxu0 0
  %631 = vmatprep.subr.bf16.mxu0 0
  %632 = vmatpush1.bf16.msra.mxu0 0
  %633 = vmatprep.subr.bf16.mxu0 0
  %634 = vmatpush1.bf16.msra.mxu0 0
  %635 = vmatprep.subr.bf16.mxu0 0
  %636 = vmatpush1.bf16.msra.mxu0 0
  %637 = vmatprep.subr.bf16.mxu0 0
  %638 = vmatpush1.bf16.msra.mxu0 0
  %639 = vmatprep.subr.bf16.mxu0 0
  %640 = vmatpush1.bf16.msra.mxu0 0
  %641 = vmatprep.mubr.bf16.mxu0 0
  %642 = vmatmul.mubr.bf16.gmra.mrb[0].mxu0 %v566
  %v643 = vpop.f32.mrb[0].mxu0
  %v644 = vadd.f32 %v497, %v643
  %v645 = vpop.f32.mrb[0].mxu0
  %v646 = vpop.f32.mrb[0].mxu0
  %v647 = vpop.f32.mrb[0].mxu0
  %648 = vdwg.mxu0
  %v649 = vmax.f32 %v603, 0.0
  %v650 = vmax.f32 %v605, 0.0
  %v651 = vmax.f32 %v644, 0.0
  %v652 = vpack.c.bf16 %v649, %v649
  %v653 = vpack.c.bf16 %v650, %v650
  %v654 = vpack.c.bf16 %v651, %v651
  %v655 = vld [vmem:[%s5] sm:$0xf]
  %v656 = vld [vmem:[%s5 + $0x4] sm:$0xf]
  %v657 = vld [vmem:[%s5 + $0x8] sm:$0xf]
  %v658 = vld [vmem:[%s5 + $0xc] sm:$0xf]
  %v659 = vld [vmem:[%s5 + $0x10] sm:$0xf]
  %v660 = vld [vmem:[%s5 + $0x14] sm:$0xf]
  %v661 = vld [vmem:[%s5 + $0x18] sm:$0xf]
  %v662 = vld [vmem:[%s5 + $0x1c] sm:$0xf]
  %v663 = vld [vmem:[%s5 + $0x20] sm:$0xf]
  %v664 = vld [vmem:[%s5 + $0x24] sm:$0xf]
  %v665 = vld [vmem:[%s5 + $0x28] sm:$0xf]
  %v666 = vld [vmem:[%s5 + $0x2c] sm:$0xf]
  %v667 = vld [vmem:[%s5 + $0x30] sm:$0xf]
  %v668 = vld [vmem:[%s5 + $0x34] sm:$0xf]
  %v669 = vld [vmem:[%s5 + $0x38] sm:$0xf]
  %v670 = vld [vmem:[%s5 + $0x3c] sm:$0xf]
  %v671 = vld [vmem:[%s5 + $0x40] sm:$0xf]
  %v672 = vld [vmem:[%s5 + $0x44] sm:$0xf]
  %v673 = vld [vmem:[%s5 + $0x48] sm:$0xf]
  %v674 = vld [vmem:[%s5 + $0x4c] sm:$0xf]
  %v675 = vld [vmem:[%s5 + $0x50] sm:$0xf]
  %v676 = vld [vmem:[%s5 + $0x54] sm:$0xf]
  %v677 = vld [vmem:[%s5 + $0x58] sm:$0xf]
  %v678 = vld [vmem:[%s5 + $0x5c] sm:$0xf]
  %v679 = vld [vmem:[%s5 + $0x60] sm:$0xf]
  %v680 = vld [vmem:[%s5 + $0x64] sm:$0xf]
  %v681 = vld [vmem:[%s5 + $0x68] sm:$0xf]
  %v682 = vld [vmem:[%s5 + $0x6c] sm:$0xf]
  %v683 = vld [vmem:[%s5 + $0x70] sm:$0xf]
  %v684 = vld [vmem:[%s5 + $0x74] sm:$0xf]
  %v685 = vld [vmem:[%s5 + $0x78] sm:$0xf]
  %v686 = vld [vmem:[%s5 + $0x7c] sm:$0xf]
  %v687 = vld [vmem:[%s5 + $0x80] sm:$0xf]
  %v688 = vld [vmem:[%s5 + $0x84] sm:$0xf]
  %v689 = vld [vmem:[%s5 + $0x88] sm:$0xf]
  %v690 = vld [vmem:[%s5 + $0x8c] sm:$0xf]
  %v691 = vld [vmem:[%s5 + $0x90] sm:$0xf]
  %v692 = vld [vmem:[%s5 + $0x94] sm:$0xf]
  %v693 = vld [vmem:[%s5 + $0x98] sm:$0xf]
  %v694 = vld [vmem:[%s5 + $0x9c] sm:$0xf]
  %v695 = vld [vmem:[%s5 + $0xa0] sm:$0xf]
  %v696 = vld [vmem:[%s5 + $0xa4] sm:$0xf]
  %v697 = vld [vmem:[%s5 + $0xa8] sm:$0xf]
  %v698 = vld [vmem:[%s5 + $0xac] sm:$0xf]
  %v699 = vld [vmem:[%s5 + $0xb0] sm:$0xf]
  %v700 = vld [vmem:[%s5 + $0xb4] sm:$0xf]
  %v701 = vld [vmem:[%s5 + $0xb8] sm:$0xf]
  %v702 = vld [vmem:[%s5 + $0xbc] sm:$0xf]
  %v703 = vld [vmem:[%s6] sm:$0x1]
  %v705 = vlaneseq
  %v706 = vshrl.u32 %v705, 7
  %v707 = vsub.s32 0, %v706
  %v708 = vrot.slane %v703, %v707
  %v758 = vunpack.c.l.b16 %v655
  %v759 = vunpack.c.l.b16 %v656
  %v760 = vunpack.c.l.b16 %v657
  %v761 = vunpack.c.l.b16 %v658
  %v762 = vunpack.c.l.b16 %v659
  %v763 = vunpack.c.l.b16 %v660
  %v764 = vunpack.c.l.b16 %v661
  %v765 = vunpack.c.l.b16 %v662
  %v766 = vunpack.c.l.b16 %v663
  %v767 = vunpack.c.l.b16 %v664
  %v768 = vunpack.c.l.b16 %v665
  %v769 = vunpack.c.l.b16 %v666
  %v770 = vunpack.c.l.b16 %v667
  %v771 = vunpack.c.l.b16 %v668
  %v772 = vunpack.c.l.b16 %v669
  %v773 = vunpack.c.l.b16 %v670
  %v774 = vunpack.c.l.b16 %v671
  %v775 = vunpack.c.l.b16 %v672
  %v776 = vunpack.c.l.b16 %v673
  %v777 = vunpack.c.l.b16 %v674
  %v778 = vunpack.c.l.b16 %v675
  %v779 = vunpack.c.l.b16 %v676
  %v780 = vunpack.c.l.b16 %v677
  %v781 = vunpack.c.l.b16 %v678
  %v782 = vunpack.c.l.b16 %v679
  %v783 = vunpack.c.l.b16 %v680
  %v784 = vunpack.c.l.b16 %v681
  %v785 = vunpack.c.l.b16 %v682
  %v786 = vunpack.c.l.b16 %v683
  %v787 = vunpack.c.l.b16 %v684
  %v788 = vunpack.c.l.b16 %v685
  %v789 = vunpack.c.l.b16 %v686
  %v790 = vunpack.c.l.b16 %v687
  %v791 = vunpack.c.l.b16 %v688
  %v792 = vunpack.c.l.b16 %v689
  %v793 = vunpack.c.l.b16 %v690
  %v794 = vunpack.c.l.b16 %v691
  %v795 = vunpack.c.l.b16 %v692
  %v796 = vunpack.c.l.b16 %v693
  %v797 = vunpack.c.l.b16 %v694
  %v798 = vunpack.c.l.b16 %v695
  %v799 = vunpack.c.l.b16 %v696
  %v800 = vunpack.c.l.b16 %v697
  %v801 = vunpack.c.l.b16 %v698
  %v802 = vunpack.c.l.b16 %v699
  %v803 = vunpack.c.l.b16 %v700
  %v804 = vunpack.c.l.b16 %v701
  %v805 = vunpack.c.l.b16 %v702
  %v806 = vpack.c.b16 %v759, %v758
  %v807 = vpack.c.b16 %v761, %v760
  %v808 = vpack.c.b16 %v763, %v762
  %v809 = vpack.c.b16 %v765, %v764
  %v810 = vpack.c.b16 %v767, %v766
  %v811 = vpack.c.b16 %v769, %v768
  %v812 = vpack.c.b16 %v771, %v770
  %v813 = vpack.c.b16 %v773, %v772
  %v814 = vpack.c.b16 %v775, %v774
  %v815 = vpack.c.b16 %v777, %v776
  %v816 = vpack.c.b16 %v779, %v778
  %v817 = vpack.c.b16 %v781, %v780
  %v818 = vpack.c.b16 %v783, %v782
  %v819 = vpack.c.b16 %v785, %v784
  %v820 = vpack.c.b16 %v787, %v786
  %v821 = vpack.c.b16 %v789, %v788
  %v822 = vpack.c.b16 %v791, %v790
  %v823 = vpack.c.b16 %v793, %v792
  %v824 = vpack.c.b16 %v795, %v794
  %v825 = vpack.c.b16 %v797, %v796
  %v826 = vpack.c.b16 %v799, %v798
  %v827 = vpack.c.b16 %v801, %v800
  %v828 = vpack.c.b16 %v803, %v802
  %v829 = vpack.c.b16 %v805, %v804
  %854 = vmatprep.subr.bf16.mxu0 0
  %855 = vmatpush1.bf16.msra.mxu0 %v806
  %856 = vmatprep.subr.bf16.mxu0 0
  %857 = vmatpush1.bf16.msra.mxu0 %v807
  %858 = vmatprep.subr.bf16.mxu0 0
  %859 = vmatpush1.bf16.msra.mxu0 %v808
  %860 = vmatprep.subr.bf16.mxu0 0
  %861 = vmatpush1.bf16.msra.mxu0 %v809
  %862 = vmatprep.subr.bf16.mxu0 0
  %863 = vmatpush1.bf16.msra.mxu0 %v810
  %864 = vmatprep.subr.bf16.mxu0 0
  %865 = vmatpush1.bf16.msra.mxu0 %v811
  %866 = vmatprep.subr.bf16.mxu0 0
  %867 = vmatpush1.bf16.msra.mxu0 %v812
  %868 = vmatprep.subr.bf16.mxu0 0
  %869 = vmatpush1.bf16.msra.mxu0 %v813
  %870 = vmatprep.subr.bf16.mxu0 0
  %871 = vmatpush1.bf16.msra.mxu0 %v814
  %872 = vmatprep.subr.bf16.mxu0 0
  %873 = vmatpush1.bf16.msra.mxu0 %v815
  %874 = vmatprep.subr.bf16.mxu0 0
  %875 = vmatpush1.bf16.msra.mxu0 %v816
  %876 = vmatprep.subr.bf16.mxu0 0
  %877 = vmatpush1.bf16.msra.mxu0 %v817
  %878 = vmatprep.subr.bf16.mxu0 0
  %879 = vmatpush1.bf16.msra.mxu0 %v818
  %880 = vmatprep.subr.bf16.mxu0 0
  %881 = vmatpush1.bf16.msra.mxu0 %v819
  %882 = vmatprep.subr.bf16.mxu0 0
  %883 = vmatpush1.bf16.msra.mxu0 %v820
  %884 = vmatprep.subr.bf16.mxu0 0
  %885 = vmatpush1.bf16.msra.mxu0 %v821
  %886 = vmatprep.mubr.bf16.mxu0 %v653
  %887 = vmatmul.mubr.bf16.gmra.mrb[0].mxu0 %v652
  %v888 = vpop.f32.mrb[0].mxu0
  %v889 = vadd.f32 %v708, %v888
  %v890 = vpop.f32.mrb[0].mxu0
  %v891 = vpop.f32.mrb[0].mxu0
  %v892 = vpop.f32.mrb[0].mxu0
  %893 = vdwg.mxu0
  %894 = vmatprep.subr.bf16.mxu0 0
  %895 = vmatpush1.bf16.msra.mxu0 %v822
  %896 = vmatprep.subr.bf16.mxu0 0
  %897 = vmatpush1.bf16.msra.mxu0 %v823
  %898 = vmatprep.subr.bf16.mxu0 0
  %899 = vmatpush1.bf16.msra.mxu0 %v824
  %900 = vmatprep.subr.bf16.mxu0 0
  %901 = vmatpush1.bf16.msra.mxu0 %v825
  %902 = vmatprep.subr.bf16.mxu0 0
  %903 = vmatpush1.bf16.msra.mxu0 %v826
  %904 = vmatprep.subr.bf16.mxu0 0
  %905 = vmatpush1.bf16.msra.mxu0 %v827
  %906 = vmatprep.subr.bf16.mxu0 0
  %907 = vmatpush1.bf16.msra.mxu0 %v828
  %908 = vmatprep.subr.bf16.mxu0 0
  %909 = vmatpush1.bf16.msra.mxu0 %v829
  %910 = vmatprep.subr.bf16.mxu0 0
  %911 = vmatpush1.bf16.msra.mxu0 0
  %912 = vmatprep.subr.bf16.mxu0 0
  %913 = vmatpush1.bf16.msra.mxu0 0
  %914 = vmatprep.subr.bf16.mxu0 0
  %915 = vmatpush1.bf16.msra.mxu0 0
  %916 = vmatprep.subr.bf16.mxu0 0
  %917 = vmatpush1.bf16.msra.mxu0 0
  %918 = vmatprep.subr.bf16.mxu0 0
  %919 = vmatpush1.bf16.msra.mxu0 0
  %920 = vmatprep.subr.bf16.mxu0 0
  %921 = vmatpush1.bf16.msra.mxu0 0
  %922 = vmatprep.subr.bf16.mxu0 0
  %923 = vmatpush1.bf16.msra.mxu0 0
  %924 = vmatprep.subr.bf16.mxu0 0
  %925 = vmatpush1.bf16.msra.mxu0 0
  %926 = vmatprep.mubr.bf16.mxu0 0
  %927 = vmatmul.mubr.bf16.gmra.mrb[0].mxu0 %v654
  %v928 = vpop.f32.mrb[0].mxu0
  %v929 = vadd.f32 %v889, %v928
  %v930 = vpop.f32.mrb[0].mxu0
  %v931 = vpop.f32.mrb[0].mxu0
  %v932 = vpop.f32.mrb[0].mxu0
  %933 = vdwg.mxu0
  %v934 = vlaneseq
  %v935 = vand.u32 %v934, 127
  %v936 = vtanh.pop %v929
  %vm937 = vcmp.gt.f32.partialorder %v929, 20.0
  %v938 = vmin.f32 %v929, 20.0
  %v939 = vmul.f32 %v938, 1.442695
  %v940 = vpow.pop %v939
  %v941 = vadd.f32 %v940, 1.0
  %v942 = vlog2.pop %v941
  %v943 = vmul.f32 %v942, 0.6931472
  %v944 = vmul.f32 -0.5, %v940
  %v945 = vadd.f32 %v944, 1.0
  %v946 = vmul.f32 %v945, %v940
  %v947 = vand.u32 2147483647, %v940
  %vm948 = vcmp.lt.f32.partialorder %v947, 0.0004427343
  %v949 = vsel %vm948, %v946, %v943
  %v950 = vsel %vm937, %v929, %v949
  %vm951 = vcmp.lt.s32.totalorder %v935, 3
  %vm952 = vcmp.lt.s32.totalorder %v935, 6
  %v953 = vsel %vm952, %v950, %v929
  %v954 = vsel %vm951, %v936, %v953
  %955 = vst [vmem:[%s7] sm:$0xff] %v954
  // Predicated region
  $region30: #{actor_critic_forward.5} parent=0 // pred_check
    _
  $region31: #{actor_critic_forward.5} parent=0 // pred_check_branch
    %957 = sbr.rel (0) target = $region33
  $region32: #{actor_critic_forward.5} parent=0 // pred_region
    _
  $region33: #{actor_critic_forward.5} parent=0 // pred_fallthru
    _
  // Predicated region
  $region34: #{actor_critic_forward.5} parent=0 // pred_check
    _
  $region35: #{actor_critic_forward.5} parent=0 // pred_check_branch
    %959 = sbr.rel (0) target = $region37
  $region36: #{actor_critic_forward.5} parent=0 // pred_region
    _
  $region37: #{actor_critic_forward.5} parent=0 // pred_fallthru
    _

</llo_original>
